<compile_context>
chip_gen: v6e
topology: v6e:2x2x1
jax: 0.10.0
libtpu: 0.0.40
codegen_flags: <defaults>
</compile_context>

<pallas_src>
import math

import jax
import jax.numpy as jnp
from jax.experimental import pallas as pl
from jax.experimental.pallas import tpu as pltpu


# ----------------------------------------------------------------------------
# Fused kernel: all LSTM layers + last-step fc + sigmoid in one launch.
# ----------------------------------------------------------------------------
def _make_fused_classifier_kernel(num_layers, T, B, D, H, C):
    del D, C  # shapes come from the refs

    def _cell(gates, c_prev):
        # Gate columns are pre-permuted to (i, f, o, g) in init_params, so one
        # contiguous sigmoid + one tanh cover all gates (no iota mask, no
        # double full-tile transcendentals).
        sig = jax.nn.sigmoid(gates[:, :3 * H])
        g_g = jnp.tanh(gates[:, 3 * H:])
        i_g = sig[:, 0 * H:1 * H]
        f_g = sig[:, 1 * H:2 * H]
        o_g = sig[:, 2 * H:3 * H]
        c_new = f_g * c_prev + i_g * g_g
        h_new = o_g * jnp.tanh(c_new)
        return h_new, c_new

    def kernel(*refs):
        it = iter(refs)
        x_ref = next(it)           # (T*B, D)  bf16, time-major rows: row = t*B + b
        wih0_ref = next(it)        # (D, 4H)   bf16
        whh0_ref = next(it)        # (H, 4H)   bf16
        b0_ref = next(it)          # (1, 4H)   f32
        wih_refs, whh_refs, bias_refs = [], [], []
        for _ in range(num_layers - 1):
            wih_refs.append(next(it))    # (H, 4H) bf16
            whh_refs.append(next(it))    # (H, 4H) bf16
            bias_refs.append(next(it))   # (1, 4H) f32
        fcw_ref = next(it)         # (H, C) bf16
        fcb_ref = next(it)         # (1, C) f32
        out_ref = next(it)         # (B, C) f32
        hN_ref = next(it)          # (nl, B, H) f32
        cN_ref = next(it)          # (nl, B, H) f32
        gx_sc = next(it)           # VMEM scratch (T, B, 4H) f32

        # ---- prologue: hoisted layer-0 input projection (one batched matmul).
        gx = (jnp.dot(x_ref[...], wih0_ref[...],
                      preferred_element_type=jnp.float32) + b0_ref[...])
        # Re-tile into (T, B, 4H) scratch with static slices: the one-time
        # sublane realignment cost is paid here, off the recurrence path, so
        # the serial loop gets a tile-aligned gx_sc[t] every step.
        for t in range(T):
            gx_sc[t] = gx[t * B:(t + 1) * B, :]

        # Hoist weight loads out of the serial loop (fine while the weights
        # are small; for large H stream directly from the refs inside the loop
        # to avoid vreg spill under unroll).
        whh0 = whh0_ref[...]
        wihs = [r[...] for r in wih_refs]
        whhs = [r[...] for r in whh_refs]
        biases = [r[...] for r in bias_refs]

        def step(t, carry):
            hs, cs = carry
            gates0 = gx_sc[t] + jnp.dot(hs[0].astype(jnp.bfloat16), whh0,
                                        preferred_element_type=jnp.float32)
            h_new, c_new = _cell(gates0, cs[0])
            new_hs, new_cs = [h_new], [c_new]
            x_l = h_new
            for l in range(1, num_layers):
                # Two independent MXU pushes (they pipeline); no per-step
                # lane-axis concatenate on the dependency chain.
                xb = x_l.astype(jnp.bfloat16)
                hb = hs[l].astype(jnp.bfloat16)
                gates = (jnp.dot(xb, wihs[l - 1],
                                 preferred_element_type=jnp.float32)
                         + jnp.dot(hb, whhs[l - 1],
                                   preferred_element_type=jnp.float32)
                         + biases[l - 1])
                h_new, c_new = _cell(gates, cs[l])
                new_hs.append(h_new)
                new_cs.append(c_new)
                x_l = h_new
            return tuple(new_hs), tuple(new_cs)

        h_init = tuple(jnp.zeros((B, H), jnp.float32) for _ in range(num_layers))
        c_init = tuple(jnp.zeros((B, H), jnp.float32) for _ in range(num_layers))
        # Full unroll for short sequences; partial unroll keeps LLO scheduling
        # visibility without blowing up code size / vreg live ranges for long T.
        hs, cs = jax.lax.fori_loop(0, T, step, (h_init, c_init),
                                   unroll=(True if T <= 32 else 8))

        # ---- epilogue: final states written once; fc + sigmoid fused in ----
        for l in range(num_layers):
            hN_ref[l] = hs[l]
            cN_ref[l] = cs[l]
        # RReLU / Dropout results are discarded in the original forward (dead
        # code), so fc is applied to the raw last hidden state, as in PyTorch.
        logits = (jnp.dot(hs[-1].astype(jnp.bfloat16), fcw_ref[...],
                          preferred_element_type=jnp.float32) + fcb_ref[...])
        out_ref[...] = jax.nn.sigmoid(logits).astype(out_ref.dtype)

    return kernel


def classifier_lstm_fused(params, inputs_btd):
    """inputs_btd: (B, T, D) batch-first. Returns (out, (h_n, c_n))."""
    B, T, D = inputs_btd.shape
    lstm_params = params["lstm"]
    num_layers = len(lstm_params)
    H = lstm_params[0]["w_hh_t"].shape[0]
    C = params["fc"]["w_t"].shape[1]

    # Time-major 2D bf16 view (row = t*B + b). One-time relayout + cast done
    # by XLA; makes the layer-0 input projection a single big MXU matmul.
    x_2d = jnp.transpose(inputs_btd.astype(jnp.float32),
                         (1, 0, 2)).reshape(T * B, D).astype(jnp.bfloat16)

    operands = [x_2d,
                lstm_params[0]["w_ih_t"].astype(jnp.bfloat16),
                lstm_params[0]["w_hh_t"].astype(jnp.bfloat16),
                lstm_params[0]["bias"]]
    in_specs = [
        pl.BlockSpec((T * B, D), lambda i: (0, 0)),
        pl.BlockSpec((D, 4 * H), lambda i: (0, 0)),
        pl.BlockSpec((H, 4 * H), lambda i: (0, 0)),
        pl.BlockSpec((1, 4 * H), lambda i: (0, 0)),
    ]
    for lp in lstm_params[1:]:
        operands += [lp["w_ih_t"].astype(jnp.bfloat16),
                     lp["w_hh_t"].astype(jnp.bfloat16),
                     lp["bias"]]
        in_specs += [pl.BlockSpec((H, 4 * H), lambda i: (0, 0)),
                     pl.BlockSpec((H, 4 * H), lambda i: (0, 0)),
                     pl.BlockSpec((1, 4 * H), lambda i: (0, 0))]
    operands += [params["fc"]["w_t"].astype(jnp.bfloat16), params["fc"]["bias"]]
    in_specs += [pl.BlockSpec((H, C), lambda i: (0, 0)),
                 pl.BlockSpec((1, C), lambda i: (0, 0))]

    kernel = _make_fused_classifier_kernel(num_layers, T, B, D, H, C)

    # Explicit VMEM budget sized to actual residency (with headroom), so
    # larger H/T configs do not silently hit the scoped defaults.
    est_bytes = (2 * sum(int(op.size) * op.dtype.itemsize for op in operands)
                 + T * B * 4 * H * 4                       # gx scratch (f32)
                 + 2 * (B * C + 2 * num_layers * B * H) * 4)
    vmem_limit = int(min(max(32 * 2**20, 2 * est_bytes), 100 * 2**20))

    out, h_n, c_n = pl.pallas_call(
        kernel,
        out_shape=(
            jax.ShapeDtypeStruct((B, C), jnp.float32),
            jax.ShapeDtypeStruct((num_layers, B, H), jnp.float32),
            jax.ShapeDtypeStruct((num_layers, B, H), jnp.float32),
        ),
        grid_spec=pltpu.PrefetchScalarGridSpec(
            num_scalar_prefetch=0,
            grid=(1,),
            in_specs=in_specs,
            out_specs=(
                pl.BlockSpec((B, C), lambda i: (0, 0)),
                pl.BlockSpec((num_layers, B, H), lambda i: (0, 0, 0)),
                pl.BlockSpec((num_layers, B, H), lambda i: (0, 0, 0)),
            ),
            scratch_shapes=[pltpu.VMEM((T, B, 4 * H), jnp.float32)],
        ),
        compiler_params=pltpu.CompilerParams(
            dimension_semantics=("arbitrary",),
            vmem_limit_bytes=vmem_limit),
    )(*operands)
    return out, (h_n, c_n)


# ----------------------------------------------------------------------------
# Module wrapper / params.
# ----------------------------------------------------------------------------
def init_params(key, input_dim, hidden_dim, num_layers, num_classes):
    """PyTorch-style uniform(-1/sqrt(H), 1/sqrt(H)) init.

    Weights are stored transposed ([D_in, 4H] / [H, 4H]) for right-
    multiplication on the MXU, with gate columns permuted from PyTorch's
    (i, f, g, o) to (i, f, o, g) so the kernel can apply one contiguous
    sigmoid to [:, :3H] and one tanh to [:, 3H:].  To load real PyTorch
    weights, apply the same `perm` to the transposed weight columns and to
    the summed bias.
    """
    H = hidden_dim
    perm = jnp.concatenate([jnp.arange(0, H), jnp.arange(H, 2 * H),
                            jnp.arange(3 * H, 4 * H), jnp.arange(2 * H, 3 * H)])
    params = {"lstm": [], "fc": {}}
    bound = 1.0 / (hidden_dim ** 0.5)
    for layer in range(num_layers):
        d_in = input_dim if layer == 0 else hidden_dim
        key, k1, k2, k3, k4 = jax.random.split(key, 5)
        w_ih = jax.random.uniform(k1, (4 * H, d_in),
                                  minval=-bound, maxval=bound, dtype=jnp.float32)
        w_hh = jax.random.uniform(k2, (4 * H, H),
                                  minval=-bound, maxval=bound, dtype=jnp.float32)
        b_ih = jax.random.uniform(k3, (4 * H,),
                                  minval=-bound, maxval=bound, dtype=jnp.float32)
        b_hh = jax.random.uniform(k4, (4 * H,),
                                  minval=-bound, maxval=bound, dtype=jnp.float32)
        params["lstm"].append({
            "w_ih_t": w_ih.T[:, perm],                 # (D_in, 4H), order i,f,o,g
            "w_hh_t": w_hh.T[:, perm],                 # (H, 4H)
            "bias": (b_ih + b_hh)[perm][None, :],      # (1, 4H)
        })
    key, k5, k6 = jax.random.split(key, 3)
    fc_w = jax.random.uniform(k5, (num_classes, hidden_dim),
                              minval=-bound, maxval=bound, dtype=jnp.float32)
    fc_b = jax.random.uniform(k6, (num_classes,),
                              minval=-bound, maxval=bound, dtype=jnp.float32)
    params["fc"] = {"w_t": fc_w.T, "bias": fc_b[None, :]}    # (H, C), (1, C)
    return params


@jax.jit
def classifier_lstm_forward(params, inputs_btd):
    """Matches Classifier_LSTM.forward: returns (out, (h_n, c_n)).

    out: (B, NUM_CLASSES); h_n, c_n: (num_layers, B, hidden_dim).
    """
    return classifier_lstm_fused(params, inputs_btd)


if __name__ == "__main__":
    # Small shapes consistent with the module's forward.
    B, T = 2, 8            # batch, sequence length
    INPUT_DIM = 16
    HIDDEN_DIM = 32
    N_LAYERS = 2
    NUM_CLASSES = 4

    key = jax.random.PRNGKey(0)
    key, pkey, xkey = jax.random.split(key, 3)

    params = init_params(pkey, INPUT_DIM, HIDDEN_DIM, N_LAYERS, NUM_CLASSES)
    inputs = jax.random.normal(xkey, (B, T, INPUT_DIM), dtype=jnp.float32)

    out, (h_n, c_n) = classifier_lstm_forward(params, inputs)
    jax.block_until_ready(out)
    jax.block_until_ready(h_n)
    jax.block_until_ready(c_n)

    assert out.shape == (B, NUM_CLASSES)
    assert h_n.shape == (N_LAYERS, B, HIDDEN_DIM)
    assert c_n.shape == (N_LAYERS, B, HIDDEN_DIM)
    assert bool(jnp.all(jnp.isfinite(out)))
    assert bool(jnp.all((out >= 0.0) & (out <= 1.0)))   # sigmoid range
    assert bool(jnp.all(jnp.isfinite(h_n))) and bool(jnp.all(jnp.isfinite(c_n)))
    print("KERNEL_OK")
</pallas_src>

<mosaic_0001>
module attributes {stable_mosaic.version = 11 : i64} {
  func.func @kernel(%arg0: i32, %arg1: memref<16x16xbf16, #tpu.memory_space<vmem>>, %arg2: memref<16x128xbf16, #tpu.memory_space<vmem>>, %arg3: memref<32x128xbf16, #tpu.memory_space<vmem>>, %arg4: memref<1x128xf32, #tpu.memory_space<vmem>>, %arg5: memref<32x128xbf16, #tpu.memory_space<vmem>>, %arg6: memref<32x128xbf16, #tpu.memory_space<vmem>>, %arg7: memref<1x128xf32, #tpu.memory_space<vmem>>, %arg8: memref<32x4xbf16, #tpu.memory_space<vmem>>, %arg9: memref<1x4xf32, #tpu.memory_space<vmem>>, %arg10: memref<2x4xf32, #tpu.memory_space<vmem>>, %arg11: memref<2x2x32xf32, #tpu.memory_space<vmem>>, %arg12: memref<2x2x32xf32, #tpu.memory_space<vmem>>, %arg13: memref<8x2x128xf32, #tpu.memory_space<vmem>>) attributes {dimension_semantics = [#tpu.dimension_semantics<arbitrary>], iteration_bounds = array<i64: 1>, scalar_prefetch = 0 : i64, scratch_operands = 1 : i64, tpu.core_type = #tpu.core_type<tc>, window_params = [{pipeline_mode = #tpu.pipeline_mode<synchronous>, transform_indices = @transform_0, window_bounds = array<i64: 16, 16>}, {pipeline_mode = #tpu.pipeline_mode<synchronous>, transform_indices = @transform_1, window_bounds = array<i64: 16, 128>}, {pipeline_mode = #tpu.pipeline_mode<synchronous>, transform_indices = @transform_2, window_bounds = array<i64: 32, 128>}, {pipeline_mode = #tpu.pipeline_mode<synchronous>, transform_indices = @transform_3, window_bounds = array<i64: 1, 128>}, {pipeline_mode = #tpu.pipeline_mode<synchronous>, transform_indices = @transform_4, window_bounds = array<i64: 32, 128>}, {pipeline_mode = #tpu.pipeline_mode<synchronous>, transform_indices = @transform_5, window_bounds = array<i64: 32, 128>}, {pipeline_mode = #tpu.pipeline_mode<synchronous>, transform_indices = @transform_6, window_bounds = array<i64: 1, 128>}, {pipeline_mode = #tpu.pipeline_mode<synchronous>, transform_indices = @transform_7, window_bounds = array<i64: 32, 4>}, {pipeline_mode = #tpu.pipeline_mode<synchronous>, transform_indices = @transform_8, window_bounds = array<i64: 1, 4>}, {pipeline_mode = #tpu.pipeline_mode<synchronous>, transform_indices = @transform_9, window_bounds = array<i64: 2, 4>}, {pipeline_mode = #tpu.pipeline_mode<synchronous>, transform_indices = @transform_10, window_bounds = array<i64: 2, 2, 32>}, {pipeline_mode = #tpu.pipeline_mode<synchronous>, transform_indices = @transform_11, window_bounds = array<i64: 2, 2, 32>}]} {
    %c0 = arith.constant 0 : index
    %c0_0 = arith.constant 0 : index
    %0 = vector.load %arg1[%c0, %c0_0] : memref<16x16xbf16, #tpu.memory_space<vmem>>, vector<16x16xbf16>
    %c0_1 = arith.constant 0 : index
    %c0_2 = arith.constant 0 : index
    %1 = vector.load %arg2[%c0_1, %c0_2] : memref<16x128xbf16, #tpu.memory_space<vmem>>, vector<16x128xbf16>
    %cst = arith.constant dense<0.000000e+00> : vector<16x128xf32>
    %2 = tpu.matmul %0, %1, %cst {dimension_numbers = #tpu.dot_dimension_numbers<[1], [0], [0], [1], [0, 0, 1, 1], [], []>} : vector<16x16xbf16>, vector<16x128xbf16>, vector<16x128xf32> -> vector<16x128xf32>
    %c0_3 = arith.constant 0 : index
    %c0_4 = arith.constant 0 : index
    %3 = vector.load %arg4[%c0_3, %c0_4] : memref<1x128xf32, #tpu.memory_space<vmem>>, vector<1x128xf32>
    %4 = vector.broadcast %3 : vector<1x128xf32> to vector<16x128xf32>
    %5 = arith.addf %2, %4 : vector<16x128xf32>
    %6 = vector.extract_strided_slice %5 {offsets = [0, 0], sizes = [2, 128], strides = [1, 1]} : vector<16x128xf32> to vector<2x128xf32>
    %c0_5 = arith.constant 0 : index
    %c0_6 = arith.constant 0 : index
    %c0_7 = arith.constant 0 : index
    %7 = vector.load %arg13[%c0_5, %c0_6, %c0_7] : memref<8x2x128xf32, #tpu.memory_space<vmem>>, vector<1x2x128xf32>
    %8 = vector.shape_cast %7 : vector<1x2x128xf32> to vector<2x128xf32>
    %9 = vector.shape_cast %6 : vector<2x128xf32> to vector<1x2x128xf32>
    tpu.vector_store %arg13[%c0_5, %c0_6, %c0_7], %9 {strides = array<i32>} : memref<8x2x128xf32, #tpu.memory_space<vmem>>, vector<1x2x128xf32>,
    %10 = vector.extract_strided_slice %5 {offsets = [2, 0], sizes = [2, 128], strides = [1, 1]} : vector<16x128xf32> to vector<2x128xf32>
    %c1 = arith.constant 1 : index
    %c0_8 = arith.constant 0 : index
    %c0_9 = arith.constant 0 : index
    %11 = vector.load %arg13[%c1, %c0_8, %c0_9] : memref<8x2x128xf32, #tpu.memory_space<vmem>>, vector<1x2x128xf32>
    %12 = vector.shape_cast %11 : vector<1x2x128xf32> to vector<2x128xf32>
    %13 = vector.shape_cast %10 : vector<2x128xf32> to vector<1x2x128xf32>
    tpu.vector_store %arg13[%c1, %c0_8, %c0_9], %13 {strides = array<i32>} : memref<8x2x128xf32, #tpu.memory_space<vmem>>, vector<1x2x128xf32>,
    %14 = vector.extract_strided_slice %5 {offsets = [4, 0], sizes = [2, 128], strides = [1, 1]} : vector<16x128xf32> to vector<2x128xf32>
    %c2 = arith.constant 2 : index
    %c0_10 = arith.constant 0 : index
    %c0_11 = arith.constant 0 : index
    %15 = vector.load %arg13[%c2, %c0_10, %c0_11] : memref<8x2x128xf32, #tpu.memory_space<vmem>>, vector<1x2x128xf32>
    %16 = vector.shape_cast %15 : vector<1x2x128xf32> to vector<2x128xf32>
    %17 = vector.shape_cast %14 : vector<2x128xf32> to vector<1x2x128xf32>
    tpu.vector_store %arg13[%c2, %c0_10, %c0_11], %17 {strides = array<i32>} : memref<8x2x128xf32, #tpu.memory_space<vmem>>, vector<1x2x128xf32>,
    %18 = vector.extract_strided_slice %5 {offsets = [6, 0], sizes = [2, 128], strides = [1, 1]} : vector<16x128xf32> to vector<2x128xf32>
    %c3 = arith.constant 3 : index
    %c0_12 = arith.constant 0 : index
    %c0_13 = arith.constant 0 : index
    %19 = vector.load %arg13[%c3, %c0_12, %c0_13] : memref<8x2x128xf32, #tpu.memory_space<vmem>>, vector<1x2x128xf32>
    %20 = vector.shape_cast %19 : vector<1x2x128xf32> to vector<2x128xf32>
    %21 = vector.shape_cast %18 : vector<2x128xf32> to vector<1x2x128xf32>
    tpu.vector_store %arg13[%c3, %c0_12, %c0_13], %21 {strides = array<i32>} : memref<8x2x128xf32, #tpu.memory_space<vmem>>, vector<1x2x128xf32>,
    %22 = vector.extract_strided_slice %5 {offsets = [8, 0], sizes = [2, 128], strides = [1, 1]} : vector<16x128xf32> to vector<2x128xf32>
    %c4 = arith.constant 4 : index
    %c0_14 = arith.constant 0 : index
    %c0_15 = arith.constant 0 : index
    %23 = vector.load %arg13[%c4, %c0_14, %c0_15] : memref<8x2x128xf32, #tpu.memory_space<vmem>>, vector<1x2x128xf32>
    %24 = vector.shape_cast %23 : vector<1x2x128xf32> to vector<2x128xf32>
    %25 = vector.shape_cast %22 : vector<2x128xf32> to vector<1x2x128xf32>
    tpu.vector_store %arg13[%c4, %c0_14, %c0_15], %25 {strides = array<i32>} : memref<8x2x128xf32, #tpu.memory_space<vmem>>, vector<1x2x128xf32>,
    %26 = vector.extract_strided_slice %5 {offsets = [10, 0], sizes = [2, 128], strides = [1, 1]} : vector<16x128xf32> to vector<2x128xf32>
    %c5 = arith.constant 5 : index
    %c0_16 = arith.constant 0 : index
    %c0_17 = arith.constant 0 : index
    %27 = vector.load %arg13[%c5, %c0_16, %c0_17] : memref<8x2x128xf32, #tpu.memory_space<vmem>>, vector<1x2x128xf32>
    %28 = vector.shape_cast %27 : vector<1x2x128xf32> to vector<2x128xf32>
    %29 = vector.shape_cast %26 : vector<2x128xf32> to vector<1x2x128xf32>
    tpu.vector_store %arg13[%c5, %c0_16, %c0_17], %29 {strides = array<i32>} : memref<8x2x128xf32, #tpu.memory_space<vmem>>, vector<1x2x128xf32>,
    %30 = vector.extract_strided_slice %5 {offsets = [12, 0], sizes = [2, 128], strides = [1, 1]} : vector<16x128xf32> to vector<2x128xf32>
    %c6 = arith.constant 6 : index
    %c0_18 = arith.constant 0 : index
    %c0_19 = arith.constant 0 : index
    %31 = vector.load %arg13[%c6, %c0_18, %c0_19] : memref<8x2x128xf32, #tpu.memory_space<vmem>>, vector<1x2x128xf32>
    %32 = vector.shape_cast %31 : vector<1x2x128xf32> to vector<2x128xf32>
    %33 = vector.shape_cast %30 : vector<2x128xf32> to vector<1x2x128xf32>
    tpu.vector_store %arg13[%c6, %c0_18, %c0_19], %33 {strides = array<i32>} : memref<8x2x128xf32, #tpu.memory_space<vmem>>, vector<1x2x128xf32>,
    %34 = vector.extract_strided_slice %5 {offsets = [14, 0], sizes = [2, 128], strides = [1, 1]} : vector<16x128xf32> to vector<2x128xf32>
    %c7 = arith.constant 7 : index
    %c0_20 = arith.constant 0 : index
    %c0_21 = arith.constant 0 : index
    %35 = vector.load %arg13[%c7, %c0_20, %c0_21] : memref<8x2x128xf32, #tpu.memory_space<vmem>>, vector<1x2x128xf32>
    %36 = vector.shape_cast %35 : vector<1x2x128xf32> to vector<2x128xf32>
    %37 = vector.shape_cast %34 : vector<2x128xf32> to vector<1x2x128xf32>
    tpu.vector_store %arg13[%c7, %c0_20, %c0_21], %37 {strides = array<i32>} : memref<8x2x128xf32, #tpu.memory_space<vmem>>, vector<1x2x128xf32>,
    %c0_22 = arith.constant 0 : index
    %c0_23 = arith.constant 0 : index
    %38 = vector.load %arg3[%c0_22, %c0_23] : memref<32x128xbf16, #tpu.memory_space<vmem>>, vector<32x128xbf16>
    %c0_24 = arith.constant 0 : index
    %c0_25 = arith.constant 0 : index
    %39 = vector.load %arg5[%c0_24, %c0_25] : memref<32x128xbf16, #tpu.memory_space<vmem>>, vector<32x128xbf16>
    %c0_26 = arith.constant 0 : index
    %c0_27 = arith.constant 0 : index
    %40 = vector.load %arg6[%c0_26, %c0_27] : memref<32x128xbf16, #tpu.memory_space<vmem>>, vector<32x128xbf16>
    %c0_28 = arith.constant 0 : index
    %c0_29 = arith.constant 0 : index
    %41 = vector.load %arg7[%c0_28, %c0_29] : memref<1x128xf32, #tpu.memory_space<vmem>>, vector<1x128xf32>
    %cst_30 = arith.constant 0.000000e+00 : f32
    %42 = vector.broadcast %cst_30 : f32 to vector<2x32xf32>
    %cst_31 = arith.constant 0.000000e+00 : f32
    %43 = vector.broadcast %cst_31 : f32 to vector<2x32xf32>
    %cst_32 = arith.constant 0.000000e+00 : f32
    %44 = vector.broadcast %cst_32 : f32 to vector<2x32xf32>
    %cst_33 = arith.constant 0.000000e+00 : f32
    %45 = vector.broadcast %cst_33 : f32 to vector<2x32xf32>
    %c0_i32 = arith.constant 0 : i32
    %46 = arith.index_cast %c0_i32 : i32 to index
    %c0_34 = arith.constant 0 : index
    %c0_35 = arith.constant 0 : index
    %47 = vector.load %arg13[%46, %c0_34, %c0_35] : memref<8x2x128xf32, #tpu.memory_space<vmem>>, vector<1x2x128xf32>
    %48 = vector.shape_cast %47 : vector<1x2x128xf32> to vector<2x128xf32>
    %49 = arith.truncf %42 : vector<2x32xf32> to vector<2x32xbf16>
    %cst_36 = arith.constant dense<0.000000e+00> : vector<2x128xf32>
    %50 = tpu.matmul %49, %38, %cst_36 {dimension_numbers = #tpu.dot_dimension_numbers<[1], [0], [0], [1], [0, 0, 1, 1], [], []>} : vector<2x32xbf16>, vector<32x128xbf16>, vector<2x128xf32> -> vector<2x128xf32>
    %51 = arith.addf %48, %50 : vector<2x128xf32>
    %52 = vector.extract_strided_slice %51 {offsets = [0, 0], sizes = [2, 96], strides = [1, 1]} : vector<2x128xf32> to vector<2x96xf32>
    %53 = arith.negf %52 : vector<2x96xf32>
    %54 = math.exp %53 : vector<2x96xf32>
    %cst_37 = arith.constant 1.000000e+00 : f32
    %55 = vector.broadcast %cst_37 : f32 to vector<2x96xf32>
    %56 = arith.addf %55, %54 : vector<2x96xf32>
    %57 = arith.divf %55, %56 : vector<2x96xf32>
    %58 = vector.extract_strided_slice %51 {offsets = [0, 96], sizes = [2, 32], strides = [1, 1]} : vector<2x128xf32> to vector<2x32xf32>
    %59 = math.tanh %58 : vector<2x32xf32>
    %60 = vector.extract_strided_slice %57 {offsets = [0, 0], sizes = [2, 32], strides = [1, 1]} : vector<2x96xf32> to vector<2x32xf32>
    %61 = vector.extract_strided_slice %57 {offsets = [0, 32], sizes = [2, 32], strides = [1, 1]} : vector<2x96xf32> to vector<2x32xf32>
    %62 = vector.extract_strided_slice %57 {offsets = [0, 64], sizes = [2, 32], strides = [1, 1]} : vector<2x96xf32> to vector<2x32xf32>
    %63 = arith.mulf %61, %44 : vector<2x32xf32>
    %64 = arith.mulf %60, %59 : vector<2x32xf32>
    %65 = arith.addf %63, %64 : vector<2x32xf32>
    %66 = math.tanh %65 : vector<2x32xf32>
    %67 = arith.mulf %62, %66 : vector<2x32xf32>
    %68 = arith.truncf %67 : vector<2x32xf32> to vector<2x32xbf16>
    %69 = arith.truncf %43 : vector<2x32xf32> to vector<2x32xbf16>
    %cst_38 = arith.constant dense<0.000000e+00> : vector<2x128xf32>
    %70 = tpu.matmul %68, %39, %cst_38 {dimension_numbers = #tpu.dot_dimension_numbers<[1], [0], [0], [1], [0, 0, 1, 1], [], []>} : vector<2x32xbf16>, vector<32x128xbf16>, vector<2x128xf32> -> vector<2x128xf32>
    %cst_39 = arith.constant dense<0.000000e+00> : vector<2x128xf32>
    %71 = tpu.matmul %69, %40, %cst_39 {dimension_numbers = #tpu.dot_dimension_numbers<[1], [0], [0], [1], [0, 0, 1, 1], [], []>} : vector<2x32xbf16>, vector<32x128xbf16>, vector<2x128xf32> -> vector<2x128xf32>
    %72 = arith.addf %70, %71 : vector<2x128xf32>
    %73 = vector.broadcast %41 : vector<1x128xf32> to vector<2x128xf32>
    %74 = arith.addf %72, %73 : vector<2x128xf32>
    %75 = vector.extract_strided_slice %74 {offsets = [0, 0], sizes = [2, 96], strides = [1, 1]} : vector<2x128xf32> to vector<2x96xf32>
    %76 = arith.negf %75 : vector<2x96xf32>
    %77 = math.exp %76 : vector<2x96xf32>
    %cst_40 = arith.constant 1.000000e+00 : f32
    %78 = vector.broadcast %cst_40 : f32 to vector<2x96xf32>
    %79 = arith.addf %78, %77 : vector<2x96xf32>
    %80 = arith.divf %78, %79 : vector<2x96xf32>
    %81 = vector.extract_strided_slice %74 {offsets = [0, 96], sizes = [2, 32], strides = [1, 1]} : vector<2x128xf32> to vector<2x32xf32>
    %82 = math.tanh %81 : vector<2x32xf32>
    %83 = vector.extract_strided_slice %80 {offsets = [0, 0], sizes = [2, 32], strides = [1, 1]} : vector<2x96xf32> to vector<2x32xf32>
    %84 = vector.extract_strided_slice %80 {offsets = [0, 32], sizes = [2, 32], strides = [1, 1]} : vector<2x96xf32> to vector<2x32xf32>
    %85 = vector.extract_strided_slice %80 {offsets = [0, 64], sizes = [2, 32], strides = [1, 1]} : vector<2x96xf32> to vector<2x32xf32>
    %86 = arith.mulf %84, %45 : vector<2x32xf32>
    %87 = arith.mulf %83, %82 : vector<2x32xf32>
    %88 = arith.addf %86, %87 : vector<2x32xf32>
    %89 = math.tanh %88 : vector<2x32xf32>
    %90 = arith.mulf %85, %89 : vector<2x32xf32>
    %c1_i32 = arith.constant 1 : i32
    %91 = arith.index_cast %c1_i32 : i32 to index
    %c0_41 = arith.constant 0 : index
    %c0_42 = arith.constant 0 : index
    %92 = vector.load %arg13[%91, %c0_41, %c0_42] : memref<8x2x128xf32, #tpu.memory_space<vmem>>, vector<1x2x128xf32>
    %93 = vector.shape_cast %92 : vector<1x2x128xf32> to vector<2x128xf32>
    %94 = arith.truncf %67 : vector<2x32xf32> to vector<2x32xbf16>
    %cst_43 = arith.constant dense<0.000000e+00> : vector<2x128xf32>
    %95 = tpu.matmul %94, %38, %cst_43 {dimension_numbers = #tpu.dot_dimension_numbers<[1], [0], [0], [1], [0, 0, 1, 1], [], []>} : vector<2x32xbf16>, vector<32x128xbf16>, vector<2x128xf32> -> vector<2x128xf32>
    %96 = arith.addf %93, %95 : vector<2x128xf32>
    %97 = vector.extract_strided_slice %96 {offsets = [0, 0], sizes = [2, 96], strides = [1, 1]} : vector<2x128xf32> to vector<2x96xf32>
    %98 = arith.negf %97 : vector<2x96xf32>
    %99 = math.exp %98 : vector<2x96xf32>
    %cst_44 = arith.constant 1.000000e+00 : f32
    %100 = vector.broadcast %cst_44 : f32 to vector<2x96xf32>
    %101 = arith.addf %100, %99 : vector<2x96xf32>
    %102 = arith.divf %100, %101 : vector<2x96xf32>
    %103 = vector.extract_strided_slice %96 {offsets = [0, 96], sizes = [2, 32], strides = [1, 1]} : vector<2x128xf32> to vector<2x32xf32>
    %104 = math.tanh %103 : vector<2x32xf32>
    %105 = vector.extract_strided_slice %102 {offsets = [0, 0], sizes = [2, 32], strides = [1, 1]} : vector<2x96xf32> to vector<2x32xf32>
    %106 = vector.extract_strided_slice %102 {offsets = [0, 32], sizes = [2, 32], strides = [1, 1]} : vector<2x96xf32> to vector<2x32xf32>
    %107 = vector.extract_strided_slice %102 {offsets = [0, 64], sizes = [2, 32], strides = [1, 1]} : vector<2x96xf32> to vector<2x32xf32>
    %108 = arith.mulf %106, %65 : vector<2x32xf32>
    %109 = arith.mulf %105, %104 : vector<2x32xf32>
    %110 = arith.addf %108, %109 : vector<2x32xf32>
    %111 = math.tanh %110 : vector<2x32xf32>
    %112 = arith.mulf %107, %111 : vector<2x32xf32>
    %113 = arith.truncf %112 : vector<2x32xf32> to vector<2x32xbf16>
    %114 = arith.truncf %90 : vector<2x32xf32> to vector<2x32xbf16>
    %cst_45 = arith.constant dense<0.000000e+00> : vector<2x128xf32>
    %115 = tpu.matmul %113, %39, %cst_45 {dimension_numbers = #tpu.dot_dimension_numbers<[1], [0], [0], [1], [0, 0, 1, 1], [], []>} : vector<2x32xbf16>, vector<32x128xbf16>, vector<2x128xf32> -> vector<2x128xf32>
    %cst_46 = arith.constant dense<0.000000e+00> : vector<2x128xf32>
    %116 = tpu.matmul %114, %40, %cst_46 {dimension_numbers = #tpu.dot_dimension_numbers<[1], [0], [0], [1], [0, 0, 1, 1], [], []>} : vector<2x32xbf16>, vector<32x128xbf16>, vector<2x128xf32> -> vector<2x128xf32>
    %117 = arith.addf %115, %116 : vector<2x128xf32>
    %118 = vector.broadcast %41 : vector<1x128xf32> to vector<2x128xf32>
    %119 = arith.addf %117, %118 : vector<2x128xf32>
    %120 = vector.extract_strided_slice %119 {offsets = [0, 0], sizes = [2, 96], strides = [1, 1]} : vector<2x128xf32> to vector<2x96xf32>
    %121 = arith.negf %120 : vector<2x96xf32>
    %122 = math.exp %121 : vector<2x96xf32>
    %cst_47 = arith.constant 1.000000e+00 : f32
    %123 = vector.broadcast %cst_47 : f32 to vector<2x96xf32>
    %124 = arith.addf %123, %122 : vector<2x96xf32>
    %125 = arith.divf %123, %124 : vector<2x96xf32>
    %126 = vector.extract_strided_slice %119 {offsets = [0, 96], sizes = [2, 32], strides = [1, 1]} : vector<2x128xf32> to vector<2x32xf32>
    %127 = math.tanh %126 : vector<2x32xf32>
    %128 = vector.extract_strided_slice %125 {offsets = [0, 0], sizes = [2, 32], strides = [1, 1]} : vector<2x96xf32> to vector<2x32xf32>
    %129 = vector.extract_strided_slice %125 {offsets = [0, 32], sizes = [2, 32], strides = [1, 1]} : vector<2x96xf32> to vector<2x32xf32>
    %130 = vector.extract_strided_slice %125 {offsets = [0, 64], sizes = [2, 32], strides = [1, 1]} : vector<2x96xf32> to vector<2x32xf32>
    %131 = arith.mulf %129, %88 : vector<2x32xf32>
    %132 = arith.mulf %128, %127 : vector<2x32xf32>
    %133 = arith.addf %131, %132 : vector<2x32xf32>
    %134 = math.tanh %133 : vector<2x32xf32>
    %135 = arith.mulf %130, %134 : vector<2x32xf32>
    %c2_i32 = arith.constant 2 : i32
    %136 = arith.index_cast %c2_i32 : i32 to index
    %c0_48 = arith.constant 0 : index
    %c0_49 = arith.constant 0 : index
    %137 = vector.load %arg13[%136, %c0_48, %c0_49] : memref<8x2x128xf32, #tpu.memory_space<vmem>>, vector<1x2x128xf32>
    %138 = vector.shape_cast %137 : vector<1x2x128xf32> to vector<2x128xf32>
    %139 = arith.truncf %112 : vector<2x32xf32> to vector<2x32xbf16>
    %cst_50 = arith.constant dense<0.000000e+00> : vector<2x128xf32>
    %140 = tpu.matmul %139, %38, %cst_50 {dimension_numbers = #tpu.dot_dimension_numbers<[1], [0], [0], [1], [0, 0, 1, 1], [], []>} : vector<2x32xbf16>, vector<32x128xbf16>, vector<2x128xf32> -> vector<2x128xf32>
    %141 = arith.addf %138, %140 : vector<2x128xf32>
    %142 = vector.extract_strided_slice %141 {offsets = [0, 0], sizes = [2, 96], strides = [1, 1]} : vector<2x128xf32> to vector<2x96xf32>
    %143 = arith.negf %142 : vector<2x96xf32>
    %144 = math.exp %143 : vector<2x96xf32>
    %cst_51 = arith.constant 1.000000e+00 : f32
    %145 = vector.broadcast %cst_51 : f32 to vector<2x96xf32>
    %146 = arith.addf %145, %144 : vector<2x96xf32>
    %147 = arith.divf %145, %146 : vector<2x96xf32>
    %148 = vector.extract_strided_slice %141 {offsets = [0, 96], sizes = [2, 32], strides = [1, 1]} : vector<2x128xf32> to vector<2x32xf32>
    %149 = math.tanh %148 : vector<2x32xf32>
    %150 = vector.extract_strided_slice %147 {offsets = [0, 0], sizes = [2, 32], strides = [1, 1]} : vector<2x96xf32> to vector<2x32xf32>
    %151 = vector.extract_strided_slice %147 {offsets = [0, 32], sizes = [2, 32], strides = [1, 1]} : vector<2x96xf32> to vector<2x32xf32>
    %152 = vector.extract_strided_slice %147 {offsets = [0, 64], sizes = [2, 32], strides = [1, 1]} : vector<2x96xf32> to vector<2x32xf32>
    %153 = arith.mulf %151, %110 : vector<2x32xf32>
    %154 = arith.mulf %150, %149 : vector<2x32xf32>
    %155 = arith.addf %153, %154 : vector<2x32xf32>
    %156 = math.tanh %155 : vector<2x32xf32>
    %157 = arith.mulf %152, %156 : vector<2x32xf32>
    %158 = arith.truncf %157 : vector<2x32xf32> to vector<2x32xbf16>
    %159 = arith.truncf %135 : vector<2x32xf32> to vector<2x32xbf16>
    %cst_52 = arith.constant dense<0.000000e+00> : vector<2x128xf32>
    %160 = tpu.matmul %158, %39, %cst_52 {dimension_numbers = #tpu.dot_dimension_numbers<[1], [0], [0], [1], [0, 0, 1, 1], [], []>} : vector<2x32xbf16>, vector<32x128xbf16>, vector<2x128xf32> -> vector<2x128xf32>
    %cst_53 = arith.constant dense<0.000000e+00> : vector<2x128xf32>
    %161 = tpu.matmul %159, %40, %cst_53 {dimension_numbers = #tpu.dot_dimension_numbers<[1], [0], [0], [1], [0, 0, 1, 1], [], []>} : vector<2x32xbf16>, vector<32x128xbf16>, vector<2x128xf32> -> vector<2x128xf32>
    %162 = arith.addf %160, %161 : vector<2x128xf32>
    %163 = vector.broadcast %41 : vector<1x128xf32> to vector<2x128xf32>
    %164 = arith.addf %162, %163 : vector<2x128xf32>
    %165 = vector.extract_strided_slice %164 {offsets = [0, 0], sizes = [2, 96], strides = [1, 1]} : vector<2x128xf32> to vector<2x96xf32>
    %166 = arith.negf %165 : vector<2x96xf32>
    %167 = math.exp %166 : vector<2x96xf32>
    %cst_54 = arith.constant 1.000000e+00 : f32
    %168 = vector.broadcast %cst_54 : f32 to vector<2x96xf32>
    %169 = arith.addf %168, %167 : vector<2x96xf32>
    %170 = arith.divf %168, %169 : vector<2x96xf32>
    %171 = vector.extract_strided_slice %164 {offsets = [0, 96], sizes = [2, 32], strides = [1, 1]} : vector<2x128xf32> to vector<2x32xf32>
    %172 = math.tanh %171 : vector<2x32xf32>
    %173 = vector.extract_strided_slice %170 {offsets = [0, 0], sizes = [2, 32], strides = [1, 1]} : vector<2x96xf32> to vector<2x32xf32>
    %174 = vector.extract_strided_slice %170 {offsets = [0, 32], sizes = [2, 32], strides = [1, 1]} : vector<2x96xf32> to vector<2x32xf32>
    %175 = vector.extract_strided_slice %170 {offsets = [0, 64], sizes = [2, 32], strides = [1, 1]} : vector<2x96xf32> to vector<2x32xf32>
    %176 = arith.mulf %174, %133 : vector<2x32xf32>
    %177 = arith.mulf %173, %172 : vector<2x32xf32>
    %178 = arith.addf %176, %177 : vector<2x32xf32>
    %179 = math.tanh %178 : vector<2x32xf32>
    %180 = arith.mulf %175, %179 : vector<2x32xf32>
    %c3_i32 = arith.constant 3 : i32
    %181 = arith.index_cast %c3_i32 : i32 to index
    %c0_55 = arith.constant 0 : index
    %c0_56 = arith.constant 0 : index
    %182 = vector.load %arg13[%181, %c0_55, %c0_56] : memref<8x2x128xf32, #tpu.memory_space<vmem>>, vector<1x2x128xf32>
    %183 = vector.shape_cast %182 : vector<1x2x128xf32> to vector<2x128xf32>
    %184 = arith.truncf %157 : vector<2x32xf32> to vector<2x32xbf16>
    %cst_57 = arith.constant dense<0.000000e+00> : vector<2x128xf32>
    %185 = tpu.matmul %184, %38, %cst_57 {dimension_numbers = #tpu.dot_dimension_numbers<[1], [0], [0], [1], [0, 0, 1, 1], [], []>} : vector<2x32xbf16>, vector<32x128xbf16>, vector<2x128xf32> -> vector<2x128xf32>
    %186 = arith.addf %183, %185 : vector<2x128xf32>
    %187 = vector.extract_strided_slice %186 {offsets = [0, 0], sizes = [2, 96], strides = [1, 1]} : vector<2x128xf32> to vector<2x96xf32>
    %188 = arith.negf %187 : vector<2x96xf32>
    %189 = math.exp %188 : vector<2x96xf32>
    %cst_58 = arith.constant 1.000000e+00 : f32
    %190 = vector.broadcast %cst_58 : f32 to vector<2x96xf32>
    %191 = arith.addf %190, %189 : vector<2x96xf32>
    %192 = arith.divf %190, %191 : vector<2x96xf32>
    %193 = vector.extract_strided_slice %186 {offsets = [0, 96], sizes = [2, 32], strides = [1, 1]} : vector<2x128xf32> to vector<2x32xf32>
    %194 = math.tanh %193 : vector<2x32xf32>
    %195 = vector.extract_strided_slice %192 {offsets = [0, 0], sizes = [2, 32], strides = [1, 1]} : vector<2x96xf32> to vector<2x32xf32>
    %196 = vector.extract_strided_slice %192 {offsets = [0, 32], sizes = [2, 32], strides = [1, 1]} : vector<2x96xf32> to vector<2x32xf32>
    %197 = vector.extract_strided_slice %192 {offsets = [0, 64], sizes = [2, 32], strides = [1, 1]} : vector<2x96xf32> to vector<2x32xf32>
    %198 = arith.mulf %196, %155 : vector<2x32xf32>
    %199 = arith.mulf %195, %194 : vector<2x32xf32>
    %200 = arith.addf %198, %199 : vector<2x32xf32>
    %201 = math.tanh %200 : vector<2x32xf32>
    %202 = arith.mulf %197, %201 : vector<2x32xf32>
    %203 = arith.truncf %202 : vector<2x32xf32> to vector<2x32xbf16>
    %204 = arith.truncf %180 : vector<2x32xf32> to vector<2x32xbf16>
    %cst_59 = arith.constant dense<0.000000e+00> : vector<2x128xf32>
    %205 = tpu.matmul %203, %39, %cst_59 {dimension_numbers = #tpu.dot_dimension_numbers<[1], [0], [0], [1], [0, 0, 1, 1], [], []>} : vector<2x32xbf16>, vector<32x128xbf16>, vector<2x128xf32> -> vector<2x128xf32>
    %cst_60 = arith.constant dense<0.000000e+00> : vector<2x128xf32>
    %206 = tpu.matmul %204, %40, %cst_60 {dimension_numbers = #tpu.dot_dimension_numbers<[1], [0], [0], [1], [0, 0, 1, 1], [], []>} : vector<2x32xbf16>, vector<32x128xbf16>, vector<2x128xf32> -> vector<2x128xf32>
    %207 = arith.addf %205, %206 : vector<2x128xf32>
    %208 = vector.broadcast %41 : vector<1x128xf32> to vector<2x128xf32>
    %209 = arith.addf %207, %208 : vector<2x128xf32>
    %210 = vector.extract_strided_slice %209 {offsets = [0, 0], sizes = [2, 96], strides = [1, 1]} : vector<2x128xf32> to vector<2x96xf32>
    %211 = arith.negf %210 : vector<2x96xf32>
    %212 = math.exp %211 : vector<2x96xf32>
    %cst_61 = arith.constant 1.000000e+00 : f32
    %213 = vector.broadcast %cst_61 : f32 to vector<2x96xf32>
    %214 = arith.addf %213, %212 : vector<2x96xf32>
    %215 = arith.divf %213, %214 : vector<2x96xf32>
    %216 = vector.extract_strided_slice %209 {offsets = [0, 96], sizes = [2, 32], strides = [1, 1]} : vector<2x128xf32> to vector<2x32xf32>
    %217 = math.tanh %216 : vector<2x32xf32>
    %218 = vector.extract_strided_slice %215 {offsets = [0, 0], sizes = [2, 32], strides = [1, 1]} : vector<2x96xf32> to vector<2x32xf32>
    %219 = vector.extract_strided_slice %215 {offsets = [0, 32], sizes = [2, 32], strides = [1, 1]} : vector<2x96xf32> to vector<2x32xf32>
    %220 = vector.extract_strided_slice %215 {offsets = [0, 64], sizes = [2, 32], strides = [1, 1]} : vector<2x96xf32> to vector<2x32xf32>
    %221 = arith.mulf %219, %178 : vector<2x32xf32>
    %222 = arith.mulf %218, %217 : vector<2x32xf32>
    %223 = arith.addf %221, %222 : vector<2x32xf32>
    %224 = math.tanh %223 : vector<2x32xf32>
    %225 = arith.mulf %220, %224 : vector<2x32xf32>
    %c4_i32 = arith.constant 4 : i32
    %226 = arith.index_cast %c4_i32 : i32 to index
    %c0_62 = arith.constant 0 : index
    %c0_63 = arith.constant 0 : index
    %227 = vector.load %arg13[%226, %c0_62, %c0_63] : memref<8x2x128xf32, #tpu.memory_space<vmem>>, vector<1x2x128xf32>
    %228 = vector.shape_cast %227 : vector<1x2x128xf32> to vector<2x128xf32>
    %229 = arith.truncf %202 : vector<2x32xf32> to vector<2x32xbf16>
    %cst_64 = arith.constant dense<0.000000e+00> : vector<2x128xf32>
    %230 = tpu.matmul %229, %38, %cst_64 {dimension_numbers = #tpu.dot_dimension_numbers<[1], [0], [0], [1], [0, 0, 1, 1], [], []>} : vector<2x32xbf16>, vector<32x128xbf16>, vector<2x128xf32> -> vector<2x128xf32>
    %231 = arith.addf %228, %230 : vector<2x128xf32>
    %232 = vector.extract_strided_slice %231 {offsets = [0, 0], sizes = [2, 96], strides = [1, 1]} : vector<2x128xf32> to vector<2x96xf32>
    %233 = arith.negf %232 : vector<2x96xf32>
    %234 = math.exp %233 : vector<2x96xf32>
    %cst_65 = arith.constant 1.000000e+00 : f32
    %235 = vector.broadcast %cst_65 : f32 to vector<2x96xf32>
    %236 = arith.addf %235, %234 : vector<2x96xf32>
    %237 = arith.divf %235, %236 : vector<2x96xf32>
    %238 = vector.extract_strided_slice %231 {offsets = [0, 96], sizes = [2, 32], strides = [1, 1]} : vector<2x128xf32> to vector<2x32xf32>
    %239 = math.tanh %238 : vector<2x32xf32>
    %240 = vector.extract_strided_slice %237 {offsets = [0, 0], sizes = [2, 32], strides = [1, 1]} : vector<2x96xf32> to vector<2x32xf32>
    %241 = vector.extract_strided_slice %237 {offsets = [0, 32], sizes = [2, 32], strides = [1, 1]} : vector<2x96xf32> to vector<2x32xf32>
    %242 = vector.extract_strided_slice %237 {offsets = [0, 64], sizes = [2, 32], strides = [1, 1]} : vector<2x96xf32> to vector<2x32xf32>
    %243 = arith.mulf %241, %200 : vector<2x32xf32>
    %244 = arith.mulf %240, %239 : vector<2x32xf32>
    %245 = arith.addf %243, %244 : vector<2x32xf32>
    %246 = math.tanh %245 : vector<2x32xf32>
    %247 = arith.mulf %242, %246 : vector<2x32xf32>
    %248 = arith.truncf %247 : vector<2x32xf32> to vector<2x32xbf16>
    %249 = arith.truncf %225 : vector<2x32xf32> to vector<2x32xbf16>
    %cst_66 = arith.constant dense<0.000000e+00> : vector<2x128xf32>
    %250 = tpu.matmul %248, %39, %cst_66 {dimension_numbers = #tpu.dot_dimension_numbers<[1], [0], [0], [1], [0, 0, 1, 1], [], []>} : vector<2x32xbf16>, vector<32x128xbf16>, vector<2x128xf32> -> vector<2x128xf32>
    %cst_67 = arith.constant dense<0.000000e+00> : vector<2x128xf32>
    %251 = tpu.matmul %249, %40, %cst_67 {dimension_numbers = #tpu.dot_dimension_numbers<[1], [0], [0], [1], [0, 0, 1, 1], [], []>} : vector<2x32xbf16>, vector<32x128xbf16>, vector<2x128xf32> -> vector<2x128xf32>
    %252 = arith.addf %250, %251 : vector<2x128xf32>
    %253 = vector.broadcast %41 : vector<1x128xf32> to vector<2x128xf32>
    %254 = arith.addf %252, %253 : vector<2x128xf32>
    %255 = vector.extract_strided_slice %254 {offsets = [0, 0], sizes = [2, 96], strides = [1, 1]} : vector<2x128xf32> to vector<2x96xf32>
    %256 = arith.negf %255 : vector<2x96xf32>
    %257 = math.exp %256 : vector<2x96xf32>
    %cst_68 = arith.constant 1.000000e+00 : f32
    %258 = vector.broadcast %cst_68 : f32 to vector<2x96xf32>
    %259 = arith.addf %258, %257 : vector<2x96xf32>
    %260 = arith.divf %258, %259 : vector<2x96xf32>
    %261 = vector.extract_strided_slice %254 {offsets = [0, 96], sizes = [2, 32], strides = [1, 1]} : vector<2x128xf32> to vector<2x32xf32>
    %262 = math.tanh %261 : vector<2x32xf32>
    %263 = vector.extract_strided_slice %260 {offsets = [0, 0], sizes = [2, 32], strides = [1, 1]} : vector<2x96xf32> to vector<2x32xf32>
    %264 = vector.extract_strided_slice %260 {offsets = [0, 32], sizes = [2, 32], strides = [1, 1]} : vector<2x96xf32> to vector<2x32xf32>
    %265 = vector.extract_strided_slice %260 {offsets = [0, 64], sizes = [2, 32], strides = [1, 1]} : vector<2x96xf32> to vector<2x32xf32>
    %266 = arith.mulf %264, %223 : vector<2x32xf32>
    %267 = arith.mulf %263, %262 : vector<2x32xf32>
    %268 = arith.addf %266, %267 : vector<2x32xf32>
    %269 = math.tanh %268 : vector<2x32xf32>
    %270 = arith.mulf %265, %269 : vector<2x32xf32>
    %c5_i32 = arith.constant 5 : i32
    %271 = arith.index_cast %c5_i32 : i32 to index
    %c0_69 = arith.constant 0 : index
    %c0_70 = arith.constant 0 : index
    %272 = vector.load %arg13[%271, %c0_69, %c0_70] : memref<8x2x128xf32, #tpu.memory_space<vmem>>, vector<1x2x128xf32>
    %273 = vector.shape_cast %272 : vector<1x2x128xf32> to vector<2x128xf32>
    %274 = arith.truncf %247 : vector<2x32xf32> to vector<2x32xbf16>
    %cst_71 = arith.constant dense<0.000000e+00> : vector<2x128xf32>
    %275 = tpu.matmul %274, %38, %cst_71 {dimension_numbers = #tpu.dot_dimension_numbers<[1], [0], [0], [1], [0, 0, 1, 1], [], []>} : vector<2x32xbf16>, vector<32x128xbf16>, vector<2x128xf32> -> vector<2x128xf32>
    %276 = arith.addf %273, %275 : vector<2x128xf32>
    %277 = vector.extract_strided_slice %276 {offsets = [0, 0], sizes = [2, 96], strides = [1, 1]} : vector<2x128xf32> to vector<2x96xf32>
    %278 = arith.negf %277 : vector<2x96xf32>
    %279 = math.exp %278 : vector<2x96xf32>
    %cst_72 = arith.constant 1.000000e+00 : f32
    %280 = vector.broadcast %cst_72 : f32 to vector<2x96xf32>
    %281 = arith.addf %280, %279 : vector<2x96xf32>
    %282 = arith.divf %280, %281 : vector<2x96xf32>
    %283 = vector.extract_strided_slice %276 {offsets = [0, 96], sizes = [2, 32], strides = [1, 1]} : vector<2x128xf32> to vector<2x32xf32>
    %284 = math.tanh %283 : vector<2x32xf32>
    %285 = vector.extract_strided_slice %282 {offsets = [0, 0], sizes = [2, 32], strides = [1, 1]} : vector<2x96xf32> to vector<2x32xf32>
    %286 = vector.extract_strided_slice %282 {offsets = [0, 32], sizes = [2, 32], strides = [1, 1]} : vector<2x96xf32> to vector<2x32xf32>
    %287 = vector.extract_strided_slice %282 {offsets = [0, 64], sizes = [2, 32], strides = [1, 1]} : vector<2x96xf32> to vector<2x32xf32>
    %288 = arith.mulf %286, %245 : vector<2x32xf32>
    %289 = arith.mulf %285, %284 : vector<2x32xf32>
    %290 = arith.addf %288, %289 : vector<2x32xf32>
    %291 = math.tanh %290 : vector<2x32xf32>
    %292 = arith.mulf %287, %291 : vector<2x32xf32>
    %293 = arith.truncf %292 : vector<2x32xf32> to vector<2x32xbf16>
    %294 = arith.truncf %270 : vector<2x32xf32> to vector<2x32xbf16>
    %cst_73 = arith.constant dense<0.000000e+00> : vector<2x128xf32>
    %295 = tpu.matmul %293, %39, %cst_73 {dimension_numbers = #tpu.dot_dimension_numbers<[1], [0], [0], [1], [0, 0, 1, 1], [], []>} : vector<2x32xbf16>, vector<32x128xbf16>, vector<2x128xf32> -> vector<2x128xf32>
    %cst_74 = arith.constant dense<0.000000e+00> : vector<2x128xf32>
    %296 = tpu.matmul %294, %40, %cst_74 {dimension_numbers = #tpu.dot_dimension_numbers<[1], [0], [0], [1], [0, 0, 1, 1], [], []>} : vector<2x32xbf16>, vector<32x128xbf16>, vector<2x128xf32> -> vector<2x128xf32>
    %297 = arith.addf %295, %296 : vector<2x128xf32>
    %298 = vector.broadcast %41 : vector<1x128xf32> to vector<2x128xf32>
    %299 = arith.addf %297, %298 : vector<2x128xf32>
    %300 = vector.extract_strided_slice %299 {offsets = [0, 0], sizes = [2, 96], strides = [1, 1]} : vector<2x128xf32> to vector<2x96xf32>
    %301 = arith.negf %300 : vector<2x96xf32>
    %302 = math.exp %301 : vector<2x96xf32>
    %cst_75 = arith.constant 1.000000e+00 : f32
    %303 = vector.broadcast %cst_75 : f32 to vector<2x96xf32>
    %304 = arith.addf %303, %302 : vector<2x96xf32>
    %305 = arith.divf %303, %304 : vector<2x96xf32>
    %306 = vector.extract_strided_slice %299 {offsets = [0, 96], sizes = [2, 32], strides = [1, 1]} : vector<2x128xf32> to vector<2x32xf32>
    %307 = math.tanh %306 : vector<2x32xf32>
    %308 = vector.extract_strided_slice %305 {offsets = [0, 0], sizes = [2, 32], strides = [1, 1]} : vector<2x96xf32> to vector<2x32xf32>
    %309 = vector.extract_strided_slice %305 {offsets = [0, 32], sizes = [2, 32], strides = [1, 1]} : vector<2x96xf32> to vector<2x32xf32>
    %310 = vector.extract_strided_slice %305 {offsets = [0, 64], sizes = [2, 32], strides = [1, 1]} : vector<2x96xf32> to vector<2x32xf32>
    %311 = arith.mulf %309, %268 : vector<2x32xf32>
    %312 = arith.mulf %308, %307 : vector<2x32xf32>
    %313 = arith.addf %311, %312 : vector<2x32xf32>
    %314 = math.tanh %313 : vector<2x32xf32>
    %315 = arith.mulf %310, %314 : vector<2x32xf32>
    %c6_i32 = arith.constant 6 : i32
    %316 = arith.index_cast %c6_i32 : i32 to index
    %c0_76 = arith.constant 0 : index
    %c0_77 = arith.constant 0 : index
    %317 = vector.load %arg13[%316, %c0_76, %c0_77] : memref<8x2x128xf32, #tpu.memory_space<vmem>>, vector<1x2x128xf32>
    %318 = vector.shape_cast %317 : vector<1x2x128xf32> to vector<2x128xf32>
    %319 = arith.truncf %292 : vector<2x32xf32> to vector<2x32xbf16>
    %cst_78 = arith.constant dense<0.000000e+00> : vector<2x128xf32>
    %320 = tpu.matmul %319, %38, %cst_78 {dimension_numbers = #tpu.dot_dimension_numbers<[1], [0], [0], [1], [0, 0, 1, 1], [], []>} : vector<2x32xbf16>, vector<32x128xbf16>, vector<2x128xf32> -> vector<2x128xf32>
    %321 = arith.addf %318, %320 : vector<2x128xf32>
    %322 = vector.extract_strided_slice %321 {offsets = [0, 0], sizes = [2, 96], strides = [1, 1]} : vector<2x128xf32> to vector<2x96xf32>
    %323 = arith.negf %322 : vector<2x96xf32>
    %324 = math.exp %323 : vector<2x96xf32>
    %cst_79 = arith.constant 1.000000e+00 : f32
    %325 = vector.broadcast %cst_79 : f32 to vector<2x96xf32>
    %326 = arith.addf %325, %324 : vector<2x96xf32>
    %327 = arith.divf %325, %326 : vector<2x96xf32>
    %328 = vector.extract_strided_slice %321 {offsets = [0, 96], sizes = [2, 32], strides = [1, 1]} : vector<2x128xf32> to vector<2x32xf32>
    %329 = math.tanh %328 : vector<2x32xf32>
    %330 = vector.extract_strided_slice %327 {offsets = [0, 0], sizes = [2, 32], strides = [1, 1]} : vector<2x96xf32> to vector<2x32xf32>
    %331 = vector.extract_strided_slice %327 {offsets = [0, 32], sizes = [2, 32], strides = [1, 1]} : vector<2x96xf32> to vector<2x32xf32>
    %332 = vector.extract_strided_slice %327 {offsets = [0, 64], sizes = [2, 32], strides = [1, 1]} : vector<2x96xf32> to vector<2x32xf32>
    %333 = arith.mulf %331, %290 : vector<2x32xf32>
    %334 = arith.mulf %330, %329 : vector<2x32xf32>
    %335 = arith.addf %333, %334 : vector<2x32xf32>
    %336 = math.tanh %335 : vector<2x32xf32>
    %337 = arith.mulf %332, %336 : vector<2x32xf32>
    %338 = arith.truncf %337 : vector<2x32xf32> to vector<2x32xbf16>
    %339 = arith.truncf %315 : vector<2x32xf32> to vector<2x32xbf16>
    %cst_80 = arith.constant dense<0.000000e+00> : vector<2x128xf32>
    %340 = tpu.matmul %338, %39, %cst_80 {dimension_numbers = #tpu.dot_dimension_numbers<[1], [0], [0], [1], [0, 0, 1, 1], [], []>} : vector<2x32xbf16>, vector<32x128xbf16>, vector<2x128xf32> -> vector<2x128xf32>
    %cst_81 = arith.constant dense<0.000000e+00> : vector<2x128xf32>
    %341 = tpu.matmul %339, %40, %cst_81 {dimension_numbers = #tpu.dot_dimension_numbers<[1], [0], [0], [1], [0, 0, 1, 1], [], []>} : vector<2x32xbf16>, vector<32x128xbf16>, vector<2x128xf32> -> vector<2x128xf32>
    %342 = arith.addf %340, %341 : vector<2x128xf32>
    %343 = vector.broadcast %41 : vector<1x128xf32> to vector<2x128xf32>
    %344 = arith.addf %342, %343 : vector<2x128xf32>
    %345 = vector.extract_strided_slice %344 {offsets = [0, 0], sizes = [2, 96], strides = [1, 1]} : vector<2x128xf32> to vector<2x96xf32>
    %346 = arith.negf %345 : vector<2x96xf32>
    %347 = math.exp %346 : vector<2x96xf32>
    %cst_82 = arith.constant 1.000000e+00 : f32
    %348 = vector.broadcast %cst_82 : f32 to vector<2x96xf32>
    %349 = arith.addf %348, %347 : vector<2x96xf32>
    %350 = arith.divf %348, %349 : vector<2x96xf32>
    %351 = vector.extract_strided_slice %344 {offsets = [0, 96], sizes = [2, 32], strides = [1, 1]} : vector<2x128xf32> to vector<2x32xf32>
    %352 = math.tanh %351 : vector<2x32xf32>
    %353 = vector.extract_strided_slice %350 {offsets = [0, 0], sizes = [2, 32], strides = [1, 1]} : vector<2x96xf32> to vector<2x32xf32>
    %354 = vector.extract_strided_slice %350 {offsets = [0, 32], sizes = [2, 32], strides = [1, 1]} : vector<2x96xf32> to vector<2x32xf32>
    %355 = vector.extract_strided_slice %350 {offsets = [0, 64], sizes = [2, 32], strides = [1, 1]} : vector<2x96xf32> to vector<2x32xf32>
    %356 = arith.mulf %354, %313 : vector<2x32xf32>
    %357 = arith.mulf %353, %352 : vector<2x32xf32>
    %358 = arith.addf %356, %357 : vector<2x32xf32>
    %359 = math.tanh %358 : vector<2x32xf32>
    %360 = arith.mulf %355, %359 : vector<2x32xf32>
    %c7_i32 = arith.constant 7 : i32
    %361 = arith.index_cast %c7_i32 : i32 to index
    %c0_83 = arith.constant 0 : index
    %c0_84 = arith.constant 0 : index
    %362 = vector.load %arg13[%361, %c0_83, %c0_84] : memref<8x2x128xf32, #tpu.memory_space<vmem>>, vector<1x2x128xf32>
    %363 = vector.shape_cast %362 : vector<1x2x128xf32> to vector<2x128xf32>
    %364 = arith.truncf %337 : vector<2x32xf32> to vector<2x32xbf16>
    %cst_85 = arith.constant dense<0.000000e+00> : vector<2x128xf32>
    %365 = tpu.matmul %364, %38, %cst_85 {dimension_numbers = #tpu.dot_dimension_numbers<[1], [0], [0], [1], [0, 0, 1, 1], [], []>} : vector<2x32xbf16>, vector<32x128xbf16>, vector<2x128xf32> -> vector<2x128xf32>
    %366 = arith.addf %363, %365 : vector<2x128xf32>
    %367 = vector.extract_strided_slice %366 {offsets = [0, 0], sizes = [2, 96], strides = [1, 1]} : vector<2x128xf32> to vector<2x96xf32>
    %368 = arith.negf %367 : vector<2x96xf32>
    %369 = math.exp %368 : vector<2x96xf32>
    %cst_86 = arith.constant 1.000000e+00 : f32
    %370 = vector.broadcast %cst_86 : f32 to vector<2x96xf32>
    %371 = arith.addf %370, %369 : vector<2x96xf32>
    %372 = arith.divf %370, %371 : vector<2x96xf32>
    %373 = vector.extract_strided_slice %366 {offsets = [0, 96], sizes = [2, 32], strides = [1, 1]} : vector<2x128xf32> to vector<2x32xf32>
    %374 = math.tanh %373 : vector<2x32xf32>
    %375 = vector.extract_strided_slice %372 {offsets = [0, 0], sizes = [2, 32], strides = [1, 1]} : vector<2x96xf32> to vector<2x32xf32>
    %376 = vector.extract_strided_slice %372 {offsets = [0, 32], sizes = [2, 32], strides = [1, 1]} : vector<2x96xf32> to vector<2x32xf32>
    %377 = vector.extract_strided_slice %372 {offsets = [0, 64], sizes = [2, 32], strides = [1, 1]} : vector<2x96xf32> to vector<2x32xf32>
    %378 = arith.mulf %376, %335 : vector<2x32xf32>
    %379 = arith.mulf %375, %374 : vector<2x32xf32>
    %380 = arith.addf %378, %379 : vector<2x32xf32>
    %381 = math.tanh %380 : vector<2x32xf32>
    %382 = arith.mulf %377, %381 : vector<2x32xf32>
    %383 = arith.truncf %382 : vector<2x32xf32> to vector<2x32xbf16>
    %384 = arith.truncf %360 : vector<2x32xf32> to vector<2x32xbf16>
    %cst_87 = arith.constant dense<0.000000e+00> : vector<2x128xf32>
    %385 = tpu.matmul %383, %39, %cst_87 {dimension_numbers = #tpu.dot_dimension_numbers<[1], [0], [0], [1], [0, 0, 1, 1], [], []>} : vector<2x32xbf16>, vector<32x128xbf16>, vector<2x128xf32> -> vector<2x128xf32>
    %cst_88 = arith.constant dense<0.000000e+00> : vector<2x128xf32>
    %386 = tpu.matmul %384, %40, %cst_88 {dimension_numbers = #tpu.dot_dimension_numbers<[1], [0], [0], [1], [0, 0, 1, 1], [], []>} : vector<2x32xbf16>, vector<32x128xbf16>, vector<2x128xf32> -> vector<2x128xf32>
    %387 = arith.addf %385, %386 : vector<2x128xf32>
    %388 = vector.broadcast %41 : vector<1x128xf32> to vector<2x128xf32>
    %389 = arith.addf %387, %388 : vector<2x128xf32>
    %390 = vector.extract_strided_slice %389 {offsets = [0, 0], sizes = [2, 96], strides = [1, 1]} : vector<2x128xf32> to vector<2x96xf32>
    %391 = arith.negf %390 : vector<2x96xf32>
    %392 = math.exp %391 : vector<2x96xf32>
    %cst_89 = arith.constant 1.000000e+00 : f32
    %393 = vector.broadcast %cst_89 : f32 to vector<2x96xf32>
    %394 = arith.addf %393, %392 : vector<2x96xf32>
    %395 = arith.divf %393, %394 : vector<2x96xf32>
    %396 = vector.extract_strided_slice %389 {offsets = [0, 96], sizes = [2, 32], strides = [1, 1]} : vector<2x128xf32> to vector<2x32xf32>
    %397 = math.tanh %396 : vector<2x32xf32>
    %398 = vector.extract_strided_slice %395 {offsets = [0, 0], sizes = [2, 32], strides = [1, 1]} : vector<2x96xf32> to vector<2x32xf32>
    %399 = vector.extract_strided_slice %395 {offsets = [0, 32], sizes = [2, 32], strides = [1, 1]} : vector<2x96xf32> to vector<2x32xf32>
    %400 = vector.extract_strided_slice %395 {offsets = [0, 64], sizes = [2, 32], strides = [1, 1]} : vector<2x96xf32> to vector<2x32xf32>
    %401 = arith.mulf %399, %358 : vector<2x32xf32>
    %402 = arith.mulf %398, %397 : vector<2x32xf32>
    %403 = arith.addf %401, %402 : vector<2x32xf32>
    %404 = math.tanh %403 : vector<2x32xf32>
    %405 = arith.mulf %400, %404 : vector<2x32xf32>
    %c8_i32 = arith.constant 8 : i32
    %c0_90 = arith.constant 0 : index
    %c0_91 = arith.constant 0 : index
    %c0_92 = arith.constant 0 : index
    %406 = vector.load %arg11[%c0_90, %c0_91, %c0_92] : memref<2x2x32xf32, #tpu.memory_space<vmem>>, vector<1x2x32xf32>
    %407 = vector.shape_cast %406 : vector<1x2x32xf32> to vector<2x32xf32>
    %408 = vector.shape_cast %382 : vector<2x32xf32> to vector<1x2x32xf32>
    tpu.vector_store %arg11[%c0_90, %c0_91, %c0_92], %408 {strides = array<i32>} : memref<2x2x32xf32, #tpu.memory_space<vmem>>, vector<1x2x32xf32>,
    %c0_93 = arith.constant 0 : index
    %c0_94 = arith.constant 0 : index
    %c0_95 = arith.constant 0 : index
    %409 = vector.load %arg12[%c0_93, %c0_94, %c0_95] : memref<2x2x32xf32, #tpu.memory_space<vmem>>, vector<1x2x32xf32>
    %410 = vector.shape_cast %409 : vector<1x2x32xf32> to vector<2x32xf32>
    %411 = vector.shape_cast %380 : vector<2x32xf32> to vector<1x2x32xf32>
    tpu.vector_store %arg12[%c0_93, %c0_94, %c0_95], %411 {strides = array<i32>} : memref<2x2x32xf32, #tpu.memory_space<vmem>>, vector<1x2x32xf32>,
    %c1_96 = arith.constant 1 : index
    %c0_97 = arith.constant 0 : index
    %c0_98 = arith.constant 0 : index
    %412 = vector.load %arg11[%c1_96, %c0_97, %c0_98] : memref<2x2x32xf32, #tpu.memory_space<vmem>>, vector<1x2x32xf32>
    %413 = vector.shape_cast %412 : vector<1x2x32xf32> to vector<2x32xf32>
    %414 = vector.shape_cast %405 : vector<2x32xf32> to vector<1x2x32xf32>
    tpu.vector_store %arg11[%c1_96, %c0_97, %c0_98], %414 {strides = array<i32>} : memref<2x2x32xf32, #tpu.memory_space<vmem>>, vector<1x2x32xf32>,
    %c1_99 = arith.constant 1 : index
    %c0_100 = arith.constant 0 : index
    %c0_101 = arith.constant 0 : index
    %415 = vector.load %arg12[%c1_99, %c0_100, %c0_101] : memref<2x2x32xf32, #tpu.memory_space<vmem>>, vector<1x2x32xf32>
    %416 = vector.shape_cast %415 : vector<1x2x32xf32> to vector<2x32xf32>
    %417 = vector.shape_cast %403 : vector<2x32xf32> to vector<1x2x32xf32>
    tpu.vector_store %arg12[%c1_99, %c0_100, %c0_101], %417 {strides = array<i32>} : memref<2x2x32xf32, #tpu.memory_space<vmem>>, vector<1x2x32xf32>,
    %418 = arith.truncf %405 : vector<2x32xf32> to vector<2x32xbf16>
    %c0_102 = arith.constant 0 : index
    %c0_103 = arith.constant 0 : index
    %419 = vector.load %arg8[%c0_102, %c0_103] : memref<32x4xbf16, #tpu.memory_space<vmem>>, vector<32x4xbf16>
    %cst_104 = arith.constant dense<0.000000e+00> : vector<2x4xf32>
    %420 = tpu.matmul %418, %419, %cst_104 {dimension_numbers = #tpu.dot_dimension_numbers<[1], [0], [0], [1], [0, 0, 1, 1], [], []>} : vector<2x32xbf16>, vector<32x4xbf16>, vector<2x4xf32> -> vector<2x4xf32>
    %c0_105 = arith.constant 0 : index
    %c0_106 = arith.constant 0 : index
    %421 = vector.load %arg9[%c0_105, %c0_106] : memref<1x4xf32, #tpu.memory_space<vmem>>, vector<1x4xf32>
    %422 = vector.broadcast %421 : vector<1x4xf32> to vector<2x4xf32>
    %423 = arith.addf %420, %422 : vector<2x4xf32>
    %424 = arith.negf %423 : vector<2x4xf32>
    %425 = math.exp %424 : vector<2x4xf32>
    %cst_107 = arith.constant 1.000000e+00 : f32
    %426 = vector.broadcast %cst_107 : f32 to vector<2x4xf32>
    %427 = arith.addf %426, %425 : vector<2x4xf32>
    %428 = arith.divf %426, %427 : vector<2x4xf32>
    %c0_108 = arith.constant 0 : index
    %c0_109 = arith.constant 0 : index
    %429 = vector.load %arg10[%c0_108, %c0_109] : memref<2x4xf32, #tpu.memory_space<vmem>>, vector<2x4xf32>
    tpu.vector_store %arg10[%c0_108, %c0_109], %428 {strides = array<i32>} : memref<2x4xf32, #tpu.memory_space<vmem>>, vector<2x4xf32>,
    return
  }
  func.func @transform_0(%arg0: i32) -> (i32, i32) {
    %c0_i32 = arith.constant 0 : i32
    %c0_i32_0 = arith.constant 0 : i32
    %c0_i32_1 = arith.constant 0 : i32
    return %c0_i32, %c0_i32_0 : i32, i32
  }
  func.func @transform_1(%arg0: i32) -> (i32, i32) {
    %c0_i32 = arith.constant 0 : i32
    %c0_i32_0 = arith.constant 0 : i32
    %c0_i32_1 = arith.constant 0 : i32
    return %c0_i32, %c0_i32_0 : i32, i32
  }
  func.func @transform_2(%arg0: i32) -> (i32, i32) {
    %c0_i32 = arith.constant 0 : i32
    %c0_i32_0 = arith.constant 0 : i32
    %c0_i32_1 = arith.constant 0 : i32
    return %c0_i32, %c0_i32_0 : i32, i32
  }
  func.func @transform_3(%arg0: i32) -> (i32, i32) {
    %c0_i32 = arith.constant 0 : i32
    %c0_i32_0 = arith.constant 0 : i32
    %c0_i32_1 = arith.constant 0 : i32
    return %c0_i32, %c0_i32_0 : i32, i32
  }
  func.func @transform_4(%arg0: i32) -> (i32, i32) {
    %c0_i32 = arith.constant 0 : i32
    %c0_i32_0 = arith.constant 0 : i32
    %c0_i32_1 = arith.constant 0 : i32
    return %c0_i32, %c0_i32_0 : i32, i32
  }
  func.func @transform_5(%arg0: i32) -> (i32, i32) {
    %c0_i32 = arith.constant 0 : i32
    %c0_i32_0 = arith.constant 0 : i32
    %c0_i32_1 = arith.constant 0 : i32
    return %c0_i32, %c0_i32_0 : i32, i32
  }
  func.func @transform_6(%arg0: i32) -> (i32, i32) {
    %c0_i32 = arith.constant 0 : i32
    %c0_i32_0 = arith.constant 0 : i32
    %c0_i32_1 = arith.constant 0 : i32
    return %c0_i32, %c0_i32_0 : i32, i32
  }
  func.func @transform_7(%arg0: i32) -> (i32, i32) {
    %c0_i32 = arith.constant 0 : i32
    %c0_i32_0 = arith.constant 0 : i32
    %c0_i32_1 = arith.constant 0 : i32
    return %c0_i32, %c0_i32_0 : i32, i32
  }
  func.func @transform_8(%arg0: i32) -> (i32, i32) {
    %c0_i32 = arith.constant 0 : i32
    %c0_i32_0 = arith.constant 0 : i32
    %c0_i32_1 = arith.constant 0 : i32
    return %c0_i32, %c0_i32_0 : i32, i32
  }
  func.func @transform_9(%arg0: i32) -> (i32, i32) {
    %c0_i32 = arith.constant 0 : i32
    %c0_i32_0 = arith.constant 0 : i32
    %c0_i32_1 = arith.constant 0 : i32
    return %c0_i32, %c0_i32_0 : i32, i32
  }
  func.func @transform_10(%arg0: i32) -> (i32, i32, i32) {
    %c0_i32 = arith.constant 0 : i32
    %c0_i32_0 = arith.constant 0 : i32
    %c0_i32_1 = arith.constant 0 : i32
    %c0_i32_2 = arith.constant 0 : i32
    return %c0_i32, %c0_i32_0, %c0_i32_1 : i32, i32, i32
  }
  func.func @transform_11(%arg0: i32) -> (i32, i32, i32) {
    %c0_i32 = arith.constant 0 : i32
    %c0_i32_0 = arith.constant 0 : i32
    %c0_i32_1 = arith.constant 0 : i32
    %c0_i32_2 = arith.constant 0 : i32
    return %c0_i32, %c0_i32_0, %c0_i32_1 : i32, i32, i32
  }
}

</mosaic_0001>

<llo_original>
// kernel: classifier_lstm_forward.1
$region0: #{classifier_lstm_forward.1}
  #allocation0 [shape = 'u32[]', space=smem, size = 0x4, offset = 0x4, fixed_abs, tag = 'smem constant byte address 0x4 - core index']
  #allocation1 [shape = 'u32[144,128]{1,0:T(1,128)}', space=vmem, size = 0x12000, scoped, tag = 'internal scratch']
  #allocation2 [shape = 'f32[8,2,128]{2,1,0:T(2,128)}', space=vmem, size = 0x2000, scoped, tag = 'scratch operand']
  %s0 = inlined_call_operand.vmem [shape: bf16[16,16], index: 0, kind: input, shape index: {}]
  %s1 = inlined_call_operand.vmem [shape: bf16[16,128], index: 1, kind: input, shape index: {}]
  %s2 = inlined_call_operand.vmem [shape: bf16[32,128], index: 2, kind: input, shape index: {}]
  %s3 = inlined_call_operand.vmem [shape: f32[1,128], index: 3, kind: input, shape index: {}]
  %s4 = inlined_call_operand.vmem [shape: bf16[32,128], index: 4, kind: input, shape index: {}]
  %s5 = inlined_call_operand.vmem [shape: bf16[32,128], index: 5, kind: input, shape index: {}]
  %s6 = inlined_call_operand.vmem [shape: f32[1,128], index: 6, kind: input, shape index: {}]
  %s7 = inlined_call_operand.vmem [shape: bf16[32,4], index: 7, kind: input, shape index: {}]
  %s8 = inlined_call_operand.vmem [shape: f32[1,4], index: 8, kind: input, shape index: {}]
  %s9 = inlined_call_operand.hbm [shape: f32[2,4], index: 9, kind: output, shape index: {0}]
  %s10 = inlined_call_operand.hbm [shape: f32[2,2,32], index: 10, kind: output, shape index: {1}]
  %s11 = inlined_call_operand.hbm [shape: f32[2,2,32], index: 11, kind: output, shape index: {2}]
  %12 = xla_tuple %s9, %s10, %s11
  %s13 = sld [smem:[#allocation0]]
  $region62: #{classifier_lstm_forward.1} parent=0
    _
  %s15 = ssub.s32 1, %s13
  %s16 = scalar_select 0, %s15, %s13
  $region1: #{classifier_lstm_forward.1} parent=0
    #allocation3 [shape = 'u8[1024]{0}', space=vmem, size = 0x400, scoped, tag = 'output window, operand 0, single buffered']
    #allocation4 [shape = 's32[1]{0}', space=sflag, size = 0x4, scoped, tag = 'scoped memory for classifier_lstm_forward.1']
    #allocation5 [shape = 'u8[2048]{0}', space=vmem, size = 0x800, scoped, tag = 'output window, operand 1, single buffered']
    #allocation6 [shape = 's32[1]{0}', space=sflag, size = 0x4, scoped, tag = 'scoped memory for classifier_lstm_forward.1']
    #allocation7 [shape = 'u8[2048]{0}', space=vmem, size = 0x800, scoped, tag = 'output window, operand 2, single buffered']
    %17 = vsyncpa [#allocation4], 0
    %18 = vsyncpa [#allocation6], 0
    // Predicated region
    $region2: #{classifier_lstm_forward.1} parent=1 // pred_check
      _
    $region3: #{classifier_lstm_forward.1} parent=1 // pred_check_branch
      %20 = sbr.rel (0) target = $region5
    $region4: #{classifier_lstm_forward.1} parent=1 // pred_region
      _
    $region5: #{classifier_lstm_forward.1} parent=1 // pred_fallthru
      _
    // Predicated region
    $region6: #{classifier_lstm_forward.1} parent=1 // pred_check
      _
    $region7: #{classifier_lstm_forward.1} parent=1 // pred_check_branch
      %22 = sbr.rel (0) target = $region9
    $region8: #{classifier_lstm_forward.1} parent=1 // pred_region
      _
    $region9: #{classifier_lstm_forward.1} parent=1 // pred_fallthru
      _
    // Predicated region
    $region10: #{classifier_lstm_forward.1} parent=1 // pred_check
      _
    $region11: #{classifier_lstm_forward.1} parent=1 // pred_check_branch
      %24 = sbr.rel (0) target = $region13
    $region12: #{classifier_lstm_forward.1} parent=1 // pred_region
      _
    $region13: #{classifier_lstm_forward.1} parent=1 // pred_fallthru
      _
    // Predicated region
    $region14: #{classifier_lstm_forward.1} parent=1 // pred_check
      _
    $region15: #{classifier_lstm_forward.1} parent=1 // pred_check_branch
      %26 = sbr.rel (0) target = $region17
    $region16: #{classifier_lstm_forward.1} parent=1 // pred_region
      _
    $region17: #{classifier_lstm_forward.1} parent=1 // pred_fallthru
      _
    // Predicated region
    $region18: #{classifier_lstm_forward.1} parent=1 // pred_check
      _
    $region19: #{classifier_lstm_forward.1} parent=1 // pred_check_branch
      %28 = sbr.rel (0) target = $region21
    $region20: #{classifier_lstm_forward.1} parent=1 // pred_region
      _
    $region21: #{classifier_lstm_forward.1} parent=1 // pred_fallthru
      _
    // Predicated region
    $region22: #{classifier_lstm_forward.1} parent=1 // pred_check
      _
    $region23: #{classifier_lstm_forward.1} parent=1 // pred_check_branch
      %30 = sbr.rel (0) target = $region25
    $region24: #{classifier_lstm_forward.1} parent=1 // pred_region
      _
    $region25: #{classifier_lstm_forward.1} parent=1 // pred_fallthru
      _
    // Predicated region
    $region26: #{classifier_lstm_forward.1} parent=1 // pred_check
      _
    $region27: #{classifier_lstm_forward.1} parent=1 // pred_check_branch
      %32 = sbr.rel (0) target = $region29
    $region28: #{classifier_lstm_forward.1} parent=1 // pred_region
      _
    $region29: #{classifier_lstm_forward.1} parent=1 // pred_fallthru
      _
    // Predicated region
    $region30: #{classifier_lstm_forward.1} parent=1 // pred_check
      _
    $region31: #{classifier_lstm_forward.1} parent=1 // pred_check_branch
      %34 = sbr.rel (0) target = $region33
    $region32: #{classifier_lstm_forward.1} parent=1 // pred_region
      _
    $region33: #{classifier_lstm_forward.1} parent=1 // pred_fallthru
      _
    // Predicated region
    $region34: #{classifier_lstm_forward.1} parent=1 // pred_check
      _
    $region35: #{classifier_lstm_forward.1} parent=1 // pred_check_branch
      %36 = sbr.rel (0) target = $region37
    $region36: #{classifier_lstm_forward.1} parent=1 // pred_region
      _
    $region37: #{classifier_lstm_forward.1} parent=1 // pred_fallthru
      _
    %v38 = vld [vmem:[%s0] sm:$0xf]
    %v39 = vld [vmem:[%s0 + $0x4] sm:$0xf]
    %v40 = vld [vmem:[%s1] sm:$0xf]
    %v41 = vld [vmem:[%s1 + $0x4] sm:$0xf]
    %v42 = vld [vmem:[%s3] sm:$0x1]
    %v44 = vlaneseq
    %v45 = vshrl.u32 %v44, 7
    %v46 = vsub.s32 0, %v45
    %v47 = vrot.slane %v42, %v46
    %v51 = vunpack.c.l.b16 %v38
    %v52 = vunpack.c.l.b16 %v39
    %v53 = vpack.c.b16 %v52, %v51
    %v56 = vunpack.c.l.b16 %v40
    %v57 = vunpack.c.l.b16 %v41
    %v58 = vpack.c.b16 %v57, %v56
    %vm60 = vcmask 130048
    %v62 = vsel %vm60, %v53, 0
    %64 = vmatprep.subr.bf16.mxu0 0
    %65 = vmatpush1.bf16.msra.mxu0 0
    %66 = vmatprep.subr.bf16.mxu0 0
    %67 = vmatpush1.bf16.msra.mxu0 0
    %68 = vmatprep.subr.bf16.mxu0 0
    %69 = vmatpush1.bf16.msra.mxu0 0
    %70 = vmatprep.subr.bf16.mxu0 0
    %71 = vmatpush1.bf16.msra.mxu0 0
    %72 = vmatprep.subr.bf16.mxu0 0
    %73 = vmatpush1.bf16.msra.mxu0 0
    %74 = vmatprep.subr.bf16.mxu0 0
    %75 = vmatpush1.bf16.msra.mxu0 0
    %76 = vmatprep.subr.bf16.mxu0 0
    %77 = vmatpush1.bf16.msra.mxu0 0
    %78 = vmatprep.subr.bf16.mxu0 0
    %79 = vmatpush1.bf16.msra.mxu0 %v58
    %80 = vmatprep.subr.bf16.mxu0 0
    %81 = vmatpush2.bf16.msra.mxu0 0
    %82 = vmatprep.subr.bf16.mxu0 0
    %83 = vmatpush2.bf16.msra.mxu0 0
    %84 = vmatprep.subr.bf16.mxu0 0
    %85 = vmatpush2.bf16.msra.mxu0 0
    %86 = vmatprep.subr.bf16.mxu0 0
    %87 = vmatpush2.bf16.msra.mxu0 0
    %88 = vmatprep.subr.bf16.mxu0 0
    %89 = vmatpush2.bf16.msra.mxu0 0
    %90 = vmatprep.subr.bf16.mxu0 0
    %91 = vmatpush2.bf16.msra.mxu0 0
    %92 = vmatprep.subr.bf16.mxu0 0
    %93 = vmatpush2.bf16.msra.mxu0 0
    %94 = vmatprep.subr.bf16.mxu0 0
    %95 = vmatpush2.bf16.msra.mxu0 0
    %96 = vmatprep.mubr.bf16.mxu0 0
    %97 = vmatmul.mubr.bf16.gmra.mxu0 %v62
    %v98 = vpop.f32.mrf.mxu0
    %v99 = vadd.f32 %v47, %v98
    %v100 = vpop.f32.mrf.mxu0
    %v101 = vpop.f32.mrf.mxu0
    %v102 = vadd.f32 %v47, %v101
    %v103 = vpop.f32.mrf.mxu0
    %104 = vdwg.mxu0
    %105 = vst [vmem:[#allocation2] sm:$0x3] %v99
    %s106 = scalar_lea.vmem [#allocation2], 2
    %107 = vst [vmem:[%s106 - $0x2] sm:$0xc] %v99
    %s108 = scalar_lea.vmem [#allocation2], 4
    %109 = vst [vmem:[%s108 - $0x4] sm:$0x30] %v99
    %s110 = scalar_lea.vmem [#allocation2], 6
    %111 = vst [vmem:[%s110 - $0x6] sm:$0xc0] %v99
    %s112 = scalar_lea.vmem [#allocation2], 8
    %113 = vst [vmem:[%s112] sm:$0x3] %v102
    %s114 = scalar_lea.vmem [#allocation2], 10
    %115 = vst [vmem:[%s114 - $0x2] sm:$0xc] %v102
    %s116 = scalar_lea.vmem [#allocation2], 12
    %117 = vst [vmem:[%s116 - $0x4] sm:$0x30] %v102
    %s118 = scalar_lea.vmem [#allocation2], 14
    %119 = vst [vmem:[%s118 - $0x6] sm:$0xc0] %v102
    %v120 = vld [vmem:[%s2] sm:$0xf]
    %v121 = vld [vmem:[%s2 + $0x4] sm:$0xf]
    %v122 = vld [vmem:[%s2 + $0x8] sm:$0xf]
    %v123 = vld [vmem:[%s2 + $0xc] sm:$0xf]
    %v124 = vld [vmem:[%s4] sm:$0xf]
    %v125 = vld [vmem:[%s4 + $0x4] sm:$0xf]
    %v126 = vld [vmem:[%s4 + $0x8] sm:$0xf]
    %v127 = vld [vmem:[%s4 + $0xc] sm:$0xf]
    %v128 = vld [vmem:[%s5] sm:$0xf]
    %v129 = vld [vmem:[%s5 + $0x4] sm:$0xf]
    %v130 = vld [vmem:[%s5 + $0x8] sm:$0xf]
    %v131 = vld [vmem:[%s5 + $0xc] sm:$0xf]
    %v132 = vld [vmem:[%s6] sm:$0x1]
    %v133 = vld [vmem:[#allocation2] sm:$0x3]
    %v138 = vunpack.c.l.b16 %v120
    %v139 = vunpack.c.l.b16 %v121
    %v140 = vunpack.c.l.b16 %v122
    %v141 = vunpack.c.l.b16 %v123
    %v142 = vpack.c.b16 %v139, %v138
    %v143 = vpack.c.b16 %v141, %v140
    %vm146 = vcmask 261120
    %v148 = vsel %vm146, 0, 0
    %150 = vmatprep.subr.bf16.mxu0 0
    %151 = vmatpush1.bf16.msra.mxu0 0
    %152 = vmatprep.subr.bf16.mxu0 0
    %153 = vmatpush1.bf16.msra.mxu0 0
    %154 = vmatprep.subr.bf16.mxu0 0
    %155 = vmatpush1.bf16.msra.mxu0 0
    %156 = vmatprep.subr.bf16.mxu0 0
    %157 = vmatpush1.bf16.msra.mxu0 0
    %158 = vmatprep.subr.bf16.mxu0 0
    %159 = vmatpush1.bf16.msra.mxu0 0
    %160 = vmatprep.subr.bf16.mxu0 0
    %161 = vmatpush1.bf16.msra.mxu0 0
    %162 = vmatprep.subr.bf16.mxu0 0
    %163 = vmatpush1.bf16.msra.mxu0 %v143
    %164 = vmatprep.subr.bf16.mxu0 0
    %165 = vmatpush1.bf16.msra.mxu0 %v142
    %166 = vmatprep.subr.bf16.mxu0 0
    %167 = vmatpush2.bf16.msra.mxu0 0
    %168 = vmatprep.subr.bf16.mxu0 0
    %169 = vmatpush2.bf16.msra.mxu0 0
    %170 = vmatprep.subr.bf16.mxu0 0
    %171 = vmatpush2.bf16.msra.mxu0 0
    %172 = vmatprep.subr.bf16.mxu0 0
    %173 = vmatpush2.bf16.msra.mxu0 0
    %174 = vmatprep.subr.bf16.mxu0 0
    %175 = vmatpush2.bf16.msra.mxu0 0
    %176 = vmatprep.subr.bf16.mxu0 0
    %177 = vmatpush2.bf16.msra.mxu0 0
    %178 = vmatprep.subr.bf16.mxu0 0
    %179 = vmatpush2.bf16.msra.mxu0 0
    %180 = vmatprep.subr.bf16.mxu0 0
    %181 = vmatpush2.bf16.msra.mxu0 0
    %182 = vmatprep.mubr.bf16.mxu0 0
    %183 = vmatmul.mubr.bf16.gmra.mxu0 %v148
    %v184 = vpop.f32.mrf.mxu0
    %v185 = vadd.f32 0.0, %v184
    %v186 = vpop.f32.mrf.mxu0
    %v187 = vpop.f32.mrf.mxu0
    %v188 = vpop.f32.mrf.mxu0
    %189 = vdwg.mxu0
    %v190 = vadd.f32 %v133, %v185
    %v191 = vxor.u32 %v190, 2147483648
    %v192 = vmul.f32 %v191, 1.442695
    %v193 = vpow.pop %v192
    %v194 = vadd.f32 %v193, 1.0
    %v195 = vrcp.pop %v194
    %v196 = vmul.f32 1.0, %v195
    %v197 = vtanh.pop %v190
    %v198 = vmul.f32 %v196, 0.0
    %200 = vrot.lane.b32.xlu0 %v197, 32
    %v201 = vpop.permute.xlu0 %200
    %v203 = vmul.f32 %v196, %v201
    %205 = vrot.lane.b32.xlu0 %v203, 32
    %v206 = vpop.permute.xlu0 %205
    %v208 = vadd.f32 %v198, %v206
    %v209 = vtanh.pop %v208
    %211 = vrot.lane.b32.xlu0 %v209, 32
    %v212 = vpop.permute.xlu0 %211
    %v214 = vmul.f32 %v196, %v212
    %v215 = vpack.c.bf16 %v214, %v214
    %v220 = vunpack.c.l.b16 %v128
    %v221 = vunpack.c.l.b16 %v129
    %v222 = vunpack.c.l.b16 %v130
    %v223 = vunpack.c.l.b16 %v131
    %v224 = vpack.c.b16 %v221, %v220
    %v225 = vpack.c.b16 %v223, %v222
    %228 = vmatprep.subr.bf16.mxu0 0
    %229 = vmatpush1.bf16.msra.mxu0 0
    %230 = vmatprep.subr.bf16.mxu0 0
    %231 = vmatpush1.bf16.msra.mxu0 0
    %232 = vmatprep.subr.bf16.mxu0 0
    %233 = vmatpush1.bf16.msra.mxu0 0
    %234 = vmatprep.subr.bf16.mxu0 0
    %235 = vmatpush1.bf16.msra.mxu0 0
    %236 = vmatprep.subr.bf16.mxu0 0
    %237 = vmatpush1.bf16.msra.mxu0 0
    %238 = vmatprep.subr.bf16.mxu0 0
    %239 = vmatpush1.bf16.msra.mxu0 0
    %240 = vmatprep.subr.bf16.mxu0 0
    %241 = vmatpush1.bf16.msra.mxu0 %v225
    %242 = vmatprep.subr.bf16.mxu0 0
    %243 = vmatpush1.bf16.msra.mxu0 %v224
    %244 = vmatprep.subr.bf16.mxu0 0
    %245 = vmatpush2.bf16.msra.mxu0 0
    %246 = vmatprep.subr.bf16.mxu0 0
    %247 = vmatpush2.bf16.msra.mxu0 0
    %248 = vmatprep.subr.bf16.mxu0 0
    %249 = vmatpush2.bf16.msra.mxu0 0
    %250 = vmatprep.subr.bf16.mxu0 0
    %251 = vmatpush2.bf16.msra.mxu0 0
    %252 = vmatprep.subr.bf16.mxu0 0
    %253 = vmatpush2.bf16.msra.mxu0 0
    %254 = vmatprep.subr.bf16.mxu0 0
    %255 = vmatpush2.bf16.msra.mxu0 0
    %256 = vmatprep.subr.bf16.mxu0 0
    %257 = vmatpush2.bf16.msra.mxu0 0
    %258 = vmatprep.subr.bf16.mxu0 0
    %259 = vmatpush2.bf16.msra.mxu0 0
    %260 = vmatprep.mubr.bf16.mxu0 0
    %261 = vmatmul.mubr.bf16.gmra.mxu0 %v148
    %v262 = vpop.f32.mrf.mxu0
    %v263 = vadd.f32 0.0, %v262
    %v264 = vpop.f32.mrf.mxu0
    %v265 = vpop.f32.mrf.mxu0
    %v266 = vpop.f32.mrf.mxu0
    %267 = vdwg.mxu0
    %269 = vrot.lane.b32.xlu0 %v215, 64
    %v270 = vpop.permute.xlu0 %269
    %v275 = vunpack.c.l.b16 %v124
    %v276 = vunpack.c.l.b16 %v125
    %v277 = vunpack.c.l.b16 %v126
    %v278 = vunpack.c.l.b16 %v127
    %v279 = vpack.c.b16 %v276, %v275
    %v280 = vpack.c.b16 %v278, %v277
    %v284 = vsel %vm146, %v270, 0
    %286 = vmatprep.subr.bf16.mxu0 0
    %287 = vmatpush1.bf16.msra.mxu0 0
    %288 = vmatprep.subr.bf16.mxu0 0
    %289 = vmatpush1.bf16.msra.mxu0 0
    %290 = vmatprep.subr.bf16.mxu0 0
    %291 = vmatpush1.bf16.msra.mxu0 0
    %292 = vmatprep.subr.bf16.mxu0 0
    %293 = vmatpush1.bf16.msra.mxu0 0
    %294 = vmatprep.subr.bf16.mxu0 0
    %295 = vmatpush1.bf16.msra.mxu0 0
    %296 = vmatprep.subr.bf16.mxu0 0
    %297 = vmatpush1.bf16.msra.mxu0 0
    %298 = vmatprep.subr.bf16.mxu0 0
    %299 = vmatpush1.bf16.msra.mxu0 %v280
    %300 = vmatprep.subr.bf16.mxu0 0
    %301 = vmatpush1.bf16.msra.mxu0 %v279
    %302 = vmatprep.subr.bf16.mxu0 0
    %303 = vmatpush2.bf16.msra.mxu0 0
    %304 = vmatprep.subr.bf16.mxu0 0
    %305 = vmatpush2.bf16.msra.mxu0 0
    %306 = vmatprep.subr.bf16.mxu0 0
    %307 = vmatpush2.bf16.msra.mxu0 0
    %308 = vmatprep.subr.bf16.mxu0 0
    %309 = vmatpush2.bf16.msra.mxu0 0
    %310 = vmatprep.subr.bf16.mxu0 0
    %311 = vmatpush2.bf16.msra.mxu0 0
    %312 = vmatprep.subr.bf16.mxu0 0
    %313 = vmatpush2.bf16.msra.mxu0 0
    %314 = vmatprep.subr.bf16.mxu0 0
    %315 = vmatpush2.bf16.msra.mxu0 0
    %316 = vmatprep.subr.bf16.mxu0 0
    %317 = vmatpush2.bf16.msra.mxu0 0
    %318 = vmatprep.mubr.bf16.mxu0 0
    %319 = vmatmul.mubr.bf16.gmra.mxu0 %v284
    %v320 = vpop.f32.mrf.mxu0
    %v321 = vadd.f32 %v263, %v320
    %v322 = vpop.f32.mrf.mxu0
    %v323 = vpop.f32.mrf.mxu0
    %v324 = vpop.f32.mrf.mxu0
    %325 = vdwg.mxu0
    %v327 = vlaneseq
    %v328 = vshrl.u32 %v327, 7
    %v329 = vsub.s32 0, %v328
    %v330 = vrot.slane %v132, %v329
    %v332 = vadd.f32 %v321, %v330
    %v333 = vxor.u32 %v332, 2147483648
    %v334 = vmul.f32 %v333, 1.442695
    %v335 = vpow.pop %v334
    %v336 = vadd.f32 %v335, 1.0
    %v337 = vrcp.pop %v336
    %v338 = vmul.f32 1.0, %v337
    %v339 = vtanh.pop %v332
    %v340 = vmul.f32 %v338, 0.0
    %342 = vrot.lane.b32.xlu0 %v339, 32
    %v343 = vpop.permute.xlu0 %342
    %v345 = vmul.f32 %v338, %v343
    %347 = vrot.lane.b32.xlu0 %v345, 32
    %v348 = vpop.permute.xlu0 %347
    %v350 = vadd.f32 %v340, %v348
    %v351 = vtanh.pop %v350
    %353 = vrot.lane.b32.xlu0 %v351, 32
    %v354 = vpop.permute.xlu0 %353
    %v356 = vmul.f32 %v338, %v354
    %v357 = vld [vmem:[%s106] sm:$0x3]
    %358 = vmatprep.subr.bf16.mxu0 0
    %359 = vmatpush1.bf16.msra.mxu0 0
    %360 = vmatprep.subr.bf16.mxu0 0
    %361 = vmatpush1.bf16.msra.mxu0 0
    %362 = vmatprep.subr.bf16.mxu0 0
    %363 = vmatpush1.bf16.msra.mxu0 0
    %364 = vmatprep.subr.bf16.mxu0 0
    %365 = vmatpush1.bf16.msra.mxu0 0
    %366 = vmatprep.subr.bf16.mxu0 0
    %367 = vmatpush1.bf16.msra.mxu0 0
    %368 = vmatprep.subr.bf16.mxu0 0
    %369 = vmatpush1.bf16.msra.mxu0 0
    %370 = vmatprep.subr.bf16.mxu0 0
    %371 = vmatpush1.bf16.msra.mxu0 %v143
    %372 = vmatprep.subr.bf16.mxu0 0
    %373 = vmatpush1.bf16.msra.mxu0 %v142
    %374 = vmatprep.subr.bf16.mxu0 0
    %375 = vmatpush2.bf16.msra.mxu0 0
    %376 = vmatprep.subr.bf16.mxu0 0
    %377 = vmatpush2.bf16.msra.mxu0 0
    %378 = vmatprep.subr.bf16.mxu0 0
    %379 = vmatpush2.bf16.msra.mxu0 0
    %380 = vmatprep.subr.bf16.mxu0 0
    %381 = vmatpush2.bf16.msra.mxu0 0
    %382 = vmatprep.subr.bf16.mxu0 0
    %383 = vmatpush2.bf16.msra.mxu0 0
    %384 = vmatprep.subr.bf16.mxu0 0
    %385 = vmatpush2.bf16.msra.mxu0 0
    %386 = vmatprep.subr.bf16.mxu0 0
    %387 = vmatpush2.bf16.msra.mxu0 0
    %388 = vmatprep.subr.bf16.mxu0 0
    %389 = vmatpush2.bf16.msra.mxu0 0
    %390 = vmatprep.mubr.bf16.mxu0 0
    %391 = vmatmul.mubr.bf16.gmra.mxu0 %v284
    %v392 = vpop.f32.mrf.mxu0
    %v393 = vadd.f32 0.0, %v392
    %v394 = vpop.f32.mrf.mxu0
    %v395 = vpop.f32.mrf.mxu0
    %v396 = vpop.f32.mrf.mxu0
    %397 = vdwg.mxu0
    %v398 = vadd.f32 %v357, %v393
    %v399 = vxor.u32 %v398, 2147483648
    %v400 = vmul.f32 %v399, 1.442695
    %v401 = vpow.pop %v400
    %v402 = vadd.f32 %v401, 1.0
    %v403 = vrcp.pop %v402
    %v404 = vmul.f32 1.0, %v403
    %v405 = vtanh.pop %v398
    %v406 = vmul.f32 %v404, %v208
    %408 = vrot.lane.b32.xlu0 %v405, 32
    %v409 = vpop.permute.xlu0 %408
    %v411 = vmul.f32 %v404, %v409
    %413 = vrot.lane.b32.xlu0 %v411, 32
    %v414 = vpop.permute.xlu0 %413
    %v416 = vadd.f32 %v406, %v414
    %v417 = vtanh.pop %v416
    %419 = vrot.lane.b32.xlu0 %v417, 32
    %v420 = vpop.permute.xlu0 %419
    %v422 = vmul.f32 %v404, %v420
    %v423 = vpack.c.bf16 %v422, %v422
    %v424 = vpack.c.bf16 %v356, %v356
    %426 = vrot.lane.b32.xlu0 %v424, 64
    %v427 = vpop.permute.xlu0 %426
    %v429 = vsel %vm146, %v427, 0
    %431 = vmatprep.subr.bf16.mxu0 0
    %432 = vmatpush1.bf16.msra.mxu0 0
    %433 = vmatprep.subr.bf16.mxu0 0
    %434 = vmatpush1.bf16.msra.mxu0 0
    %435 = vmatprep.subr.bf16.mxu0 0
    %436 = vmatpush1.bf16.msra.mxu0 0
    %437 = vmatprep.subr.bf16.mxu0 0
    %438 = vmatpush1.bf16.msra.mxu0 0
    %439 = vmatprep.subr.bf16.mxu0 0
    %440 = vmatpush1.bf16.msra.mxu0 0
    %441 = vmatprep.subr.bf16.mxu0 0
    %442 = vmatpush1.bf16.msra.mxu0 0
    %443 = vmatprep.subr.bf16.mxu0 0
    %444 = vmatpush1.bf16.msra.mxu0 %v225
    %445 = vmatprep.subr.bf16.mxu0 0
    %446 = vmatpush1.bf16.msra.mxu0 %v224
    %447 = vmatprep.subr.bf16.mxu0 0
    %448 = vmatpush2.bf16.msra.mxu0 0
    %449 = vmatprep.subr.bf16.mxu0 0
    %450 = vmatpush2.bf16.msra.mxu0 0
    %451 = vmatprep.subr.bf16.mxu0 0
    %452 = vmatpush2.bf16.msra.mxu0 0
    %453 = vmatprep.subr.bf16.mxu0 0
    %454 = vmatpush2.bf16.msra.mxu0 0
    %455 = vmatprep.subr.bf16.mxu0 0
    %456 = vmatpush2.bf16.msra.mxu0 0
    %457 = vmatprep.subr.bf16.mxu0 0
    %458 = vmatpush2.bf16.msra.mxu0 0
    %459 = vmatprep.subr.bf16.mxu0 0
    %460 = vmatpush2.bf16.msra.mxu0 0
    %461 = vmatprep.subr.bf16.mxu0 0
    %462 = vmatpush2.bf16.msra.mxu0 0
    %463 = vmatprep.mubr.bf16.mxu0 0
    %464 = vmatmul.mubr.bf16.gmra.mxu0 %v429
    %v465 = vpop.f32.mrf.mxu0
    %v466 = vadd.f32 0.0, %v465
    %v467 = vpop.f32.mrf.mxu0
    %v468 = vpop.f32.mrf.mxu0
    %v469 = vpop.f32.mrf.mxu0
    %470 = vdwg.mxu0
    %472 = vrot.lane.b32.xlu0 %v423, 64
    %v473 = vpop.permute.xlu0 %472
    %v475 = vsel %vm146, %v473, 0
    %477 = vmatprep.subr.bf16.mxu0 0
    %478 = vmatpush1.bf16.msra.mxu0 0
    %479 = vmatprep.subr.bf16.mxu0 0
    %480 = vmatpush1.bf16.msra.mxu0 0
    %481 = vmatprep.subr.bf16.mxu0 0
    %482 = vmatpush1.bf16.msra.mxu0 0
    %483 = vmatprep.subr.bf16.mxu0 0
    %484 = vmatpush1.bf16.msra.mxu0 0
    %485 = vmatprep.subr.bf16.mxu0 0
    %486 = vmatpush1.bf16.msra.mxu0 0
    %487 = vmatprep.subr.bf16.mxu0 0
    %488 = vmatpush1.bf16.msra.mxu0 0
    %489 = vmatprep.subr.bf16.mxu0 0
    %490 = vmatpush1.bf16.msra.mxu0 %v280
    %491 = vmatprep.subr.bf16.mxu0 0
    %492 = vmatpush1.bf16.msra.mxu0 %v279
    %493 = vmatprep.subr.bf16.mxu0 0
    %494 = vmatpush2.bf16.msra.mxu0 0
    %495 = vmatprep.subr.bf16.mxu0 0
    %496 = vmatpush2.bf16.msra.mxu0 0
    %497 = vmatprep.subr.bf16.mxu0 0
    %498 = vmatpush2.bf16.msra.mxu0 0
    %499 = vmatprep.subr.bf16.mxu0 0
    %500 = vmatpush2.bf16.msra.mxu0 0
    %501 = vmatprep.subr.bf16.mxu0 0
    %502 = vmatpush2.bf16.msra.mxu0 0
    %503 = vmatprep.subr.bf16.mxu0 0
    %504 = vmatpush2.bf16.msra.mxu0 0
    %505 = vmatprep.subr.bf16.mxu0 0
    %506 = vmatpush2.bf16.msra.mxu0 0
    %507 = vmatprep.subr.bf16.mxu0 0
    %508 = vmatpush2.bf16.msra.mxu0 0
    %509 = vmatprep.mubr.bf16.mxu0 0
    %510 = vmatmul.mubr.bf16.gmra.mxu0 %v475
    %v511 = vpop.f32.mrf.mxu0
    %v512 = vadd.f32 %v466, %v511
    %v513 = vpop.f32.mrf.mxu0
    %v514 = vpop.f32.mrf.mxu0
    %v515 = vpop.f32.mrf.mxu0
    %516 = vdwg.mxu0
    %v517 = vadd.f32 %v512, %v330
    %v518 = vxor.u32 %v517, 2147483648
    %v519 = vmul.f32 %v518, 1.442695
    %v520 = vpow.pop %v519
    %v521 = vadd.f32 %v520, 1.0
    %v522 = vrcp.pop %v521
    %v523 = vmul.f32 1.0, %v522
    %v524 = vtanh.pop %v517
    %v525 = vmul.f32 %v523, %v350
    %527 = vrot.lane.b32.xlu0 %v524, 32
    %v528 = vpop.permute.xlu0 %527
    %v530 = vmul.f32 %v523, %v528
    %532 = vrot.lane.b32.xlu0 %v530, 32
    %v533 = vpop.permute.xlu0 %532
    %v535 = vadd.f32 %v525, %v533
    %v536 = vtanh.pop %v535
    %538 = vrot.lane.b32.xlu0 %v536, 32
    %v539 = vpop.permute.xlu0 %538
    %v541 = vmul.f32 %v523, %v539
    %v542 = vld [vmem:[%s108] sm:$0x3]
    %543 = vmatprep.subr.bf16.mxu0 0
    %544 = vmatpush1.bf16.msra.mxu0 0
    %545 = vmatprep.subr.bf16.mxu0 0
    %546 = vmatpush1.bf16.msra.mxu0 0
    %547 = vmatprep.subr.bf16.mxu0 0
    %548 = vmatpush1.bf16.msra.mxu0 0
    %549 = vmatprep.subr.bf16.mxu0 0
    %550 = vmatpush1.bf16.msra.mxu0 0
    %551 = vmatprep.subr.bf16.mxu0 0
    %552 = vmatpush1.bf16.msra.mxu0 0
    %553 = vmatprep.subr.bf16.mxu0 0
    %554 = vmatpush1.bf16.msra.mxu0 0
    %555 = vmatprep.subr.bf16.mxu0 0
    %556 = vmatpush1.bf16.msra.mxu0 %v143
    %557 = vmatprep.subr.bf16.mxu0 0
    %558 = vmatpush1.bf16.msra.mxu0 %v142
    %559 = vmatprep.subr.bf16.mxu0 0
    %560 = vmatpush2.bf16.msra.mxu0 0
    %561 = vmatprep.subr.bf16.mxu0 0
    %562 = vmatpush2.bf16.msra.mxu0 0
    %563 = vmatprep.subr.bf16.mxu0 0
    %564 = vmatpush2.bf16.msra.mxu0 0
    %565 = vmatprep.subr.bf16.mxu0 0
    %566 = vmatpush2.bf16.msra.mxu0 0
    %567 = vmatprep.subr.bf16.mxu0 0
    %568 = vmatpush2.bf16.msra.mxu0 0
    %569 = vmatprep.subr.bf16.mxu0 0
    %570 = vmatpush2.bf16.msra.mxu0 0
    %571 = vmatprep.subr.bf16.mxu0 0
    %572 = vmatpush2.bf16.msra.mxu0 0
    %573 = vmatprep.subr.bf16.mxu0 0
    %574 = vmatpush2.bf16.msra.mxu0 0
    %575 = vmatprep.mubr.bf16.mxu0 0
    %576 = vmatmul.mubr.bf16.gmra.mxu0 %v475
    %v577 = vpop.f32.mrf.mxu0
    %v578 = vadd.f32 0.0, %v577
    %v579 = vpop.f32.mrf.mxu0
    %v580 = vpop.f32.mrf.mxu0
    %v581 = vpop.f32.mrf.mxu0
    %582 = vdwg.mxu0
    %v583 = vadd.f32 %v542, %v578
    %v584 = vxor.u32 %v583, 2147483648
    %v585 = vmul.f32 %v584, 1.442695
    %v586 = vpow.pop %v585
    %v587 = vadd.f32 %v586, 1.0
    %v588 = vrcp.pop %v587
    %v589 = vmul.f32 1.0, %v588
    %v590 = vtanh.pop %v583
    %v591 = vmul.f32 %v589, %v416
    %593 = vrot.lane.b32.xlu0 %v590, 32
    %v594 = vpop.permute.xlu0 %593
    %v596 = vmul.f32 %v589, %v594
    %598 = vrot.lane.b32.xlu0 %v596, 32
    %v599 = vpop.permute.xlu0 %598
    %v601 = vadd.f32 %v591, %v599
    %v602 = vtanh.pop %v601
    %604 = vrot.lane.b32.xlu0 %v602, 32
    %v605 = vpop.permute.xlu0 %604
    %v607 = vmul.f32 %v589, %v605
    %v608 = vpack.c.bf16 %v607, %v607
    %v609 = vpack.c.bf16 %v541, %v541
    %611 = vrot.lane.b32.xlu0 %v609, 64
    %v612 = vpop.permute.xlu0 %611
    %v614 = vsel %vm146, %v612, 0
    %616 = vmatprep.subr.bf16.mxu0 0
    %617 = vmatpush1.bf16.msra.mxu0 0
    %618 = vmatprep.subr.bf16.mxu0 0
    %619 = vmatpush1.bf16.msra.mxu0 0
    %620 = vmatprep.subr.bf16.mxu0 0
    %621 = vmatpush1.bf16.msra.mxu0 0
    %622 = vmatprep.subr.bf16.mxu0 0
    %623 = vmatpush1.bf16.msra.mxu0 0
    %624 = vmatprep.subr.bf16.mxu0 0
    %625 = vmatpush1.bf16.msra.mxu0 0
    %626 = vmatprep.subr.bf16.mxu0 0
    %627 = vmatpush1.bf16.msra.mxu0 0
    %628 = vmatprep.subr.bf16.mxu0 0
    %629 = vmatpush1.bf16.msra.mxu0 %v225
    %630 = vmatprep.subr.bf16.mxu0 0
    %631 = vmatpush1.bf16.msra.mxu0 %v224
    %632 = vmatprep.subr.bf16.mxu0 0
    %633 = vmatpush2.bf16.msra.mxu0 0
    %634 = vmatprep.subr.bf16.mxu0 0
    %635 = vmatpush2.bf16.msra.mxu0 0
    %636 = vmatprep.subr.bf16.mxu0 0
    %637 = vmatpush2.bf16.msra.mxu0 0
    %638 = vmatprep.subr.bf16.mxu0 0
    %639 = vmatpush2.bf16.msra.mxu0 0
    %640 = vmatprep.subr.bf16.mxu0 0
    %641 = vmatpush2.bf16.msra.mxu0 0
    %642 = vmatprep.subr.bf16.mxu0 0
    %643 = vmatpush2.bf16.msra.mxu0 0
    %644 = vmatprep.subr.bf16.mxu0 0
    %645 = vmatpush2.bf16.msra.mxu0 0
    %646 = vmatprep.subr.bf16.mxu0 0
    %647 = vmatpush2.bf16.msra.mxu0 0
    %648 = vmatprep.mubr.bf16.mxu0 0
    %649 = vmatmul.mubr.bf16.gmra.mxu0 %v614
    %v650 = vpop.f32.mrf.mxu0
    %v651 = vadd.f32 0.0, %v650
    %v652 = vpop.f32.mrf.mxu0
    %v653 = vpop.f32.mrf.mxu0
    %v654 = vpop.f32.mrf.mxu0
    %655 = vdwg.mxu0
    %657 = vrot.lane.b32.xlu0 %v608, 64
    %v658 = vpop.permute.xlu0 %657
    %v660 = vsel %vm146, %v658, 0
    %662 = vmatprep.subr.bf16.mxu0 0
    %663 = vmatpush1.bf16.msra.mxu0 0
    %664 = vmatprep.subr.bf16.mxu0 0
    %665 = vmatpush1.bf16.msra.mxu0 0
    %666 = vmatprep.subr.bf16.mxu0 0
    %667 = vmatpush1.bf16.msra.mxu0 0
    %668 = vmatprep.subr.bf16.mxu0 0
    %669 = vmatpush1.bf16.msra.mxu0 0
    %670 = vmatprep.subr.bf16.mxu0 0
    %671 = vmatpush1.bf16.msra.mxu0 0
    %672 = vmatprep.subr.bf16.mxu0 0
    %673 = vmatpush1.bf16.msra.mxu0 0
    %674 = vmatprep.subr.bf16.mxu0 0
    %675 = vmatpush1.bf16.msra.mxu0 %v280
    %676 = vmatprep.subr.bf16.mxu0 0
    %677 = vmatpush1.bf16.msra.mxu0 %v279
    %678 = vmatprep.subr.bf16.mxu0 0
    %679 = vmatpush2.bf16.msra.mxu0 0
    %680 = vmatprep.subr.bf16.mxu0 0
    %681 = vmatpush2.bf16.msra.mxu0 0
    %682 = vmatprep.subr.bf16.mxu0 0
    %683 = vmatpush2.bf16.msra.mxu0 0
    %684 = vmatprep.subr.bf16.mxu0 0
    %685 = vmatpush2.bf16.msra.mxu0 0
    %686 = vmatprep.subr.bf16.mxu0 0
    %687 = vmatpush2.bf16.msra.mxu0 0
    %688 = vmatprep.subr.bf16.mxu0 0
    %689 = vmatpush2.bf16.msra.mxu0 0
    %690 = vmatprep.subr.bf16.mxu0 0
    %691 = vmatpush2.bf16.msra.mxu0 0
    %692 = vmatprep.subr.bf16.mxu0 0
    %693 = vmatpush2.bf16.msra.mxu0 0
    %694 = vmatprep.mubr.bf16.mxu0 0
    %695 = vmatmul.mubr.bf16.gmra.mxu0 %v660
    %v696 = vpop.f32.mrf.mxu0
    %v697 = vadd.f32 %v651, %v696
    %v698 = vpop.f32.mrf.mxu0
    %v699 = vpop.f32.mrf.mxu0
    %v700 = vpop.f32.mrf.mxu0
    %701 = vdwg.mxu0
    %v702 = vadd.f32 %v697, %v330
    %v703 = vxor.u32 %v702, 2147483648
    %v704 = vmul.f32 %v703, 1.442695
    %v705 = vpow.pop %v704
    %v706 = vadd.f32 %v705, 1.0
    %v707 = vrcp.pop %v706
    %v708 = vmul.f32 1.0, %v707
    %v709 = vtanh.pop %v702
    %v710 = vmul.f32 %v708, %v535
    %712 = vrot.lane.b32.xlu0 %v709, 32
    %v713 = vpop.permute.xlu0 %712
    %v715 = vmul.f32 %v708, %v713
    %717 = vrot.lane.b32.xlu0 %v715, 32
    %v718 = vpop.permute.xlu0 %717
    %v720 = vadd.f32 %v710, %v718
    %v721 = vtanh.pop %v720
    %723 = vrot.lane.b32.xlu0 %v721, 32
    %v724 = vpop.permute.xlu0 %723
    %v726 = vmul.f32 %v708, %v724
    %v727 = vld [vmem:[%s110] sm:$0x3]
    %728 = vmatprep.subr.bf16.mxu0 0
    %729 = vmatpush1.bf16.msra.mxu0 0
    %730 = vmatprep.subr.bf16.mxu0 0
    %731 = vmatpush1.bf16.msra.mxu0 0
    %732 = vmatprep.subr.bf16.mxu0 0
    %733 = vmatpush1.bf16.msra.mxu0 0
    %734 = vmatprep.subr.bf16.mxu0 0
    %735 = vmatpush1.bf16.msra.mxu0 0
    %736 = vmatprep.subr.bf16.mxu0 0
    %737 = vmatpush1.bf16.msra.mxu0 0
    %738 = vmatprep.subr.bf16.mxu0 0
    %739 = vmatpush1.bf16.msra.mxu0 0
    %740 = vmatprep.subr.bf16.mxu0 0
    %741 = vmatpush1.bf16.msra.mxu0 %v143
    %742 = vmatprep.subr.bf16.mxu0 0
    %743 = vmatpush1.bf16.msra.mxu0 %v142
    %744 = vmatprep.subr.bf16.mxu0 0
    %745 = vmatpush2.bf16.msra.mxu0 0
    %746 = vmatprep.subr.bf16.mxu0 0
    %747 = vmatpush2.bf16.msra.mxu0 0
    %748 = vmatprep.subr.bf16.mxu0 0
    %749 = vmatpush2.bf16.msra.mxu0 0
    %750 = vmatprep.subr.bf16.mxu0 0
    %751 = vmatpush2.bf16.msra.mxu0 0
    %752 = vmatprep.subr.bf16.mxu0 0
    %753 = vmatpush2.bf16.msra.mxu0 0
    %754 = vmatprep.subr.bf16.mxu0 0
    %755 = vmatpush2.bf16.msra.mxu0 0
    %756 = vmatprep.subr.bf16.mxu0 0
    %757 = vmatpush2.bf16.msra.mxu0 0
    %758 = vmatprep.subr.bf16.mxu0 0
    %759 = vmatpush2.bf16.msra.mxu0 0
    %760 = vmatprep.mubr.bf16.mxu0 0
    %761 = vmatmul.mubr.bf16.gmra.mxu0 %v660
    %v762 = vpop.f32.mrf.mxu0
    %v763 = vadd.f32 0.0, %v762
    %v764 = vpop.f32.mrf.mxu0
    %v765 = vpop.f32.mrf.mxu0
    %v766 = vpop.f32.mrf.mxu0
    %767 = vdwg.mxu0
    %v768 = vadd.f32 %v727, %v763
    %v769 = vxor.u32 %v768, 2147483648
    %v770 = vmul.f32 %v769, 1.442695
    %v771 = vpow.pop %v770
    %v772 = vadd.f32 %v771, 1.0
    %v773 = vrcp.pop %v772
    %v774 = vmul.f32 1.0, %v773
    %v775 = vtanh.pop %v768
    %v776 = vmul.f32 %v774, %v601
    %778 = vrot.lane.b32.xlu0 %v775, 32
    %v779 = vpop.permute.xlu0 %778
    %v781 = vmul.f32 %v774, %v779
    %783 = vrot.lane.b32.xlu0 %v781, 32
    %v784 = vpop.permute.xlu0 %783
    %v786 = vadd.f32 %v776, %v784
    %v787 = vtanh.pop %v786
    %789 = vrot.lane.b32.xlu0 %v787, 32
    %v790 = vpop.permute.xlu0 %789
    %v792 = vmul.f32 %v774, %v790
    %v793 = vpack.c.bf16 %v792, %v792
    %v794 = vpack.c.bf16 %v726, %v726
    %796 = vrot.lane.b32.xlu0 %v794, 64
    %v797 = vpop.permute.xlu0 %796
    %v799 = vsel %vm146, %v797, 0
    %801 = vmatprep.subr.bf16.mxu0 0
    %802 = vmatpush1.bf16.msra.mxu0 0
    %803 = vmatprep.subr.bf16.mxu0 0
    %804 = vmatpush1.bf16.msra.mxu0 0
    %805 = vmatprep.subr.bf16.mxu0 0
    %806 = vmatpush1.bf16.msra.mxu0 0
    %807 = vmatprep.subr.bf16.mxu0 0
    %808 = vmatpush1.bf16.msra.mxu0 0
    %809 = vmatprep.subr.bf16.mxu0 0
    %810 = vmatpush1.bf16.msra.mxu0 0
    %811 = vmatprep.subr.bf16.mxu0 0
    %812 = vmatpush1.bf16.msra.mxu0 0
    %813 = vmatprep.subr.bf16.mxu0 0
    %814 = vmatpush1.bf16.msra.mxu0 %v225
    %815 = vmatprep.subr.bf16.mxu0 0
    %816 = vmatpush1.bf16.msra.mxu0 %v224
    %817 = vmatprep.subr.bf16.mxu0 0
    %818 = vmatpush2.bf16.msra.mxu0 0
    %819 = vmatprep.subr.bf16.mxu0 0
    %820 = vmatpush2.bf16.msra.mxu0 0
    %821 = vmatprep.subr.bf16.mxu0 0
    %822 = vmatpush2.bf16.msra.mxu0 0
    %823 = vmatprep.subr.bf16.mxu0 0
    %824 = vmatpush2.bf16.msra.mxu0 0
    %825 = vmatprep.subr.bf16.mxu0 0
    %826 = vmatpush2.bf16.msra.mxu0 0
    %827 = vmatprep.subr.bf16.mxu0 0
    %828 = vmatpush2.bf16.msra.mxu0 0
    %829 = vmatprep.subr.bf16.mxu0 0
    %830 = vmatpush2.bf16.msra.mxu0 0
    %831 = vmatprep.subr.bf16.mxu0 0
    %832 = vmatpush2.bf16.msra.mxu0 0
    %833 = vmatprep.mubr.bf16.mxu0 0
    %834 = vmatmul.mubr.bf16.gmra.mxu0 %v799
    %v835 = vpop.f32.mrf.mxu0
    %v836 = vadd.f32 0.0, %v835
    %v837 = vpop.f32.mrf.mxu0
    %v838 = vpop.f32.mrf.mxu0
    %v839 = vpop.f32.mrf.mxu0
    %840 = vdwg.mxu0
    %842 = vrot.lane.b32.xlu0 %v793, 64
    %v843 = vpop.permute.xlu0 %842
    %v845 = vsel %vm146, %v843, 0
    %847 = vmatprep.subr.bf16.mxu0 0
    %848 = vmatpush1.bf16.msra.mxu0 0
    %849 = vmatprep.subr.bf16.mxu0 0
    %850 = vmatpush1.bf16.msra.mxu0 0
    %851 = vmatprep.subr.bf16.mxu0 0
    %852 = vmatpush1.bf16.msra.mxu0 0
    %853 = vmatprep.subr.bf16.mxu0 0
    %854 = vmatpush1.bf16.msra.mxu0 0
    %855 = vmatprep.subr.bf16.mxu0 0
    %856 = vmatpush1.bf16.msra.mxu0 0
    %857 = vmatprep.subr.bf16.mxu0 0
    %858 = vmatpush1.bf16.msra.mxu0 0
    %859 = vmatprep.subr.bf16.mxu0 0
    %860 = vmatpush1.bf16.msra.mxu0 %v280
    %861 = vmatprep.subr.bf16.mxu0 0
    %862 = vmatpush1.bf16.msra.mxu0 %v279
    %863 = vmatprep.subr.bf16.mxu0 0
    %864 = vmatpush2.bf16.msra.mxu0 0
    %865 = vmatprep.subr.bf16.mxu0 0
    %866 = vmatpush2.bf16.msra.mxu0 0
    %867 = vmatprep.subr.bf16.mxu0 0
    %868 = vmatpush2.bf16.msra.mxu0 0
    %869 = vmatprep.subr.bf16.mxu0 0
    %870 = vmatpush2.bf16.msra.mxu0 0
    %871 = vmatprep.subr.bf16.mxu0 0
    %872 = vmatpush2.bf16.msra.mxu0 0
    %873 = vmatprep.subr.bf16.mxu0 0
    %874 = vmatpush2.bf16.msra.mxu0 0
    %875 = vmatprep.subr.bf16.mxu0 0
    %876 = vmatpush2.bf16.msra.mxu0 0
    %877 = vmatprep.subr.bf16.mxu0 0
    %878 = vmatpush2.bf16.msra.mxu0 0
    %879 = vmatprep.mubr.bf16.mxu0 0
    %880 = vmatmul.mubr.bf16.gmra.mxu0 %v845
    %v881 = vpop.f32.mrf.mxu0
    %v882 = vadd.f32 %v836, %v881
    %v883 = vpop.f32.mrf.mxu0
    %v884 = vpop.f32.mrf.mxu0
    %v885 = vpop.f32.mrf.mxu0
    %886 = vdwg.mxu0
    %v887 = vadd.f32 %v882, %v330
    %v888 = vxor.u32 %v887, 2147483648
    %v889 = vmul.f32 %v888, 1.442695
    %v890 = vpow.pop %v889
    %v891 = vadd.f32 %v890, 1.0
    %v892 = vrcp.pop %v891
    %v893 = vmul.f32 1.0, %v892
    %v894 = vtanh.pop %v887
    %v895 = vmul.f32 %v893, %v720
    %897 = vrot.lane.b32.xlu0 %v894, 32
    %v898 = vpop.permute.xlu0 %897
    %v900 = vmul.f32 %v893, %v898
    %902 = vrot.lane.b32.xlu0 %v900, 32
    %v903 = vpop.permute.xlu0 %902
    %v905 = vadd.f32 %v895, %v903
    %v906 = vtanh.pop %v905
    %908 = vrot.lane.b32.xlu0 %v906, 32
    %v909 = vpop.permute.xlu0 %908
    %v911 = vmul.f32 %v893, %v909
    %v912 = vld [vmem:[%s112] sm:$0x3]
    %913 = vmatprep.subr.bf16.mxu0 0
    %914 = vmatpush1.bf16.msra.mxu0 0
    %915 = vmatprep.subr.bf16.mxu0 0
    %916 = vmatpush1.bf16.msra.mxu0 0
    %917 = vmatprep.subr.bf16.mxu0 0
    %918 = vmatpush1.bf16.msra.mxu0 0
    %919 = vmatprep.subr.bf16.mxu0 0
    %920 = vmatpush1.bf16.msra.mxu0 0
    %921 = vmatprep.subr.bf16.mxu0 0
    %922 = vmatpush1.bf16.msra.mxu0 0
    %923 = vmatprep.subr.bf16.mxu0 0
    %924 = vmatpush1.bf16.msra.mxu0 0
    %925 = vmatprep.subr.bf16.mxu0 0
    %926 = vmatpush1.bf16.msra.mxu0 %v143
    %927 = vmatprep.subr.bf16.mxu0 0
    %928 = vmatpush1.bf16.msra.mxu0 %v142
    %929 = vmatprep.subr.bf16.mxu0 0
    %930 = vmatpush2.bf16.msra.mxu0 0
    %931 = vmatprep.subr.bf16.mxu0 0
    %932 = vmatpush2.bf16.msra.mxu0 0
    %933 = vmatprep.subr.bf16.mxu0 0
    %934 = vmatpush2.bf16.msra.mxu0 0
    %935 = vmatprep.subr.bf16.mxu0 0
    %936 = vmatpush2.bf16.msra.mxu0 0
    %937 = vmatprep.subr.bf16.mxu0 0
    %938 = vmatpush2.bf16.msra.mxu0 0
    %939 = vmatprep.subr.bf16.mxu0 0
    %940 = vmatpush2.bf16.msra.mxu0 0
    %941 = vmatprep.subr.bf16.mxu0 0
    %942 = vmatpush2.bf16.msra.mxu0 0
    %943 = vmatprep.subr.bf16.mxu0 0
    %944 = vmatpush2.bf16.msra.mxu0 0
    %945 = vmatprep.mubr.bf16.mxu0 0
    %946 = vmatmul.mubr.bf16.gmra.mxu0 %v845
    %v947 = vpop.f32.mrf.mxu0
    %v948 = vadd.f32 0.0, %v947
    %v949 = vpop.f32.mrf.mxu0
    %v950 = vpop.f32.mrf.mxu0
    %v951 = vpop.f32.mrf.mxu0
    %952 = vdwg.mxu0
    %v953 = vadd.f32 %v912, %v948
    %v954 = vxor.u32 %v953, 2147483648
    %v955 = vmul.f32 %v954, 1.442695
    %v956 = vpow.pop %v955
    %v957 = vadd.f32 %v956, 1.0
    %v958 = vrcp.pop %v957
    %v959 = vmul.f32 1.0, %v958
    %v960 = vtanh.pop %v953
    %v961 = vmul.f32 %v959, %v786
    %963 = vrot.lane.b32.xlu0 %v960, 32
    %v964 = vpop.permute.xlu0 %963
    %v966 = vmul.f32 %v959, %v964
    %968 = vrot.lane.b32.xlu0 %v966, 32
    %v969 = vpop.permute.xlu0 %968
    %v971 = vadd.f32 %v961, %v969
    %v972 = vtanh.pop %v971
    %974 = vrot.lane.b32.xlu0 %v972, 32
    %v975 = vpop.permute.xlu0 %974
    %v977 = vmul.f32 %v959, %v975
    %v978 = vpack.c.bf16 %v977, %v977
    %v979 = vpack.c.bf16 %v911, %v911
    %981 = vrot.lane.b32.xlu0 %v979, 64
    %v982 = vpop.permute.xlu0 %981
    %v984 = vsel %vm146, %v982, 0
    %986 = vmatprep.subr.bf16.mxu0 0
    %987 = vmatpush1.bf16.msra.mxu0 0
    %988 = vmatprep.subr.bf16.mxu0 0
    %989 = vmatpush1.bf16.msra.mxu0 0
    %990 = vmatprep.subr.bf16.mxu0 0
    %991 = vmatpush1.bf16.msra.mxu0 0
    %992 = vmatprep.subr.bf16.mxu0 0
    %993 = vmatpush1.bf16.msra.mxu0 0
    %994 = vmatprep.subr.bf16.mxu0 0
    %995 = vmatpush1.bf16.msra.mxu0 0
    %996 = vmatprep.subr.bf16.mxu0 0
    %997 = vmatpush1.bf16.msra.mxu0 0
    %998 = vmatprep.subr.bf16.mxu0 0
    %999 = vmatpush1.bf16.msra.mxu0 %v225
    %1000 = vmatprep.subr.bf16.mxu0 0
    %1001 = vmatpush1.bf16.msra.mxu0 %v224
    %1002 = vmatprep.subr.bf16.mxu0 0
    %1003 = vmatpush2.bf16.msra.mxu0 0
    %1004 = vmatprep.subr.bf16.mxu0 0
    %1005 = vmatpush2.bf16.msra.mxu0 0
    %1006 = vmatprep.subr.bf16.mxu0 0
    %1007 = vmatpush2.bf16.msra.mxu0 0
    %1008 = vmatprep.subr.bf16.mxu0 0
    %1009 = vmatpush2.bf16.msra.mxu0 0
    %1010 = vmatprep.subr.bf16.mxu0 0
    %1011 = vmatpush2.bf16.msra.mxu0 0
    %1012 = vmatprep.subr.bf16.mxu0 0
    %1013 = vmatpush2.bf16.msra.mxu0 0
    %1014 = vmatprep.subr.bf16.mxu0 0
    %1015 = vmatpush2.bf16.msra.mxu0 0
    %1016 = vmatprep.subr.bf16.mxu0 0
    %1017 = vmatpush2.bf16.msra.mxu0 0
    %1018 = vmatprep.mubr.bf16.mxu0 0
    %1019 = vmatmul.mubr.bf16.gmra.mxu0 %v984
    %v1020 = vpop.f32.mrf.mxu0
    %v1021 = vadd.f32 0.0, %v1020
    %v1022 = vpop.f32.mrf.mxu0
    %v1023 = vpop.f32.mrf.mxu0
    %v1024 = vpop.f32.mrf.mxu0
    %1025 = vdwg.mxu0
    %1027 = vrot.lane.b32.xlu0 %v978, 64
    %v1028 = vpop.permute.xlu0 %1027
    %v1030 = vsel %vm146, %v1028, 0
    %1032 = vmatprep.subr.bf16.mxu0 0
    %1033 = vmatpush1.bf16.msra.mxu0 0
    %1034 = vmatprep.subr.bf16.mxu0 0
    %1035 = vmatpush1.bf16.msra.mxu0 0
    %1036 = vmatprep.subr.bf16.mxu0 0
    %1037 = vmatpush1.bf16.msra.mxu0 0
    %1038 = vmatprep.subr.bf16.mxu0 0
    %1039 = vmatpush1.bf16.msra.mxu0 0
    %1040 = vmatprep.subr.bf16.mxu0 0
    %1041 = vmatpush1.bf16.msra.mxu0 0
    %1042 = vmatprep.subr.bf16.mxu0 0
    %1043 = vmatpush1.bf16.msra.mxu0 0
    %1044 = vmatprep.subr.bf16.mxu0 0
    %1045 = vmatpush1.bf16.msra.mxu0 %v280
    %1046 = vmatprep.subr.bf16.mxu0 0
    %1047 = vmatpush1.bf16.msra.mxu0 %v279
    %1048 = vmatprep.subr.bf16.mxu0 0
    %1049 = vmatpush2.bf16.msra.mxu0 0
    %1050 = vmatprep.subr.bf16.mxu0 0
    %1051 = vmatpush2.bf16.msra.mxu0 0
    %1052 = vmatprep.subr.bf16.mxu0 0
    %1053 = vmatpush2.bf16.msra.mxu0 0
    %1054 = vmatprep.subr.bf16.mxu0 0
    %1055 = vmatpush2.bf16.msra.mxu0 0
    %1056 = vmatprep.subr.bf16.mxu0 0
    %1057 = vmatpush2.bf16.msra.mxu0 0
    %1058 = vmatprep.subr.bf16.mxu0 0
    %1059 = vmatpush2.bf16.msra.mxu0 0
    %1060 = vmatprep.subr.bf16.mxu0 0
    %1061 = vmatpush2.bf16.msra.mxu0 0
    %1062 = vmatprep.subr.bf16.mxu0 0
    %1063 = vmatpush2.bf16.msra.mxu0 0
    %1064 = vmatprep.mubr.bf16.mxu0 0
    %1065 = vmatmul.mubr.bf16.gmra.mxu0 %v1030
    %v1066 = vpop.f32.mrf.mxu0
    %v1067 = vadd.f32 %v1021, %v1066
    %v1068 = vpop.f32.mrf.mxu0
    %v1069 = vpop.f32.mrf.mxu0
    %v1070 = vpop.f32.mrf.mxu0
    %1071 = vdwg.mxu0
    %v1072 = vadd.f32 %v1067, %v330
    %v1073 = vxor.u32 %v1072, 2147483648
    %v1074 = vmul.f32 %v1073, 1.442695
    %v1075 = vpow.pop %v1074
    %v1076 = vadd.f32 %v1075, 1.0
    %v1077 = vrcp.pop %v1076
    %v1078 = vmul.f32 1.0, %v1077
    %v1079 = vtanh.pop %v1072
    %v1080 = vmul.f32 %v1078, %v905
    %1082 = vrot.lane.b32.xlu0 %v1079, 32
    %v1083 = vpop.permute.xlu0 %1082
    %v1085 = vmul.f32 %v1078, %v1083
    %1087 = vrot.lane.b32.xlu0 %v1085, 32
    %v1088 = vpop.permute.xlu0 %1087
    %v1090 = vadd.f32 %v1080, %v1088
    %v1091 = vtanh.pop %v1090
    %1093 = vrot.lane.b32.xlu0 %v1091, 32
    %v1094 = vpop.permute.xlu0 %1093
    %v1096 = vmul.f32 %v1078, %v1094
    %v1097 = vld [vmem:[%s114] sm:$0x3]
    %1098 = vmatprep.subr.bf16.mxu0 0
    %1099 = vmatpush1.bf16.msra.mxu0 0
    %1100 = vmatprep.subr.bf16.mxu0 0
    %1101 = vmatpush1.bf16.msra.mxu0 0
    %1102 = vmatprep.subr.bf16.mxu0 0
    %1103 = vmatpush1.bf16.msra.mxu0 0
    %1104 = vmatprep.subr.bf16.mxu0 0
    %1105 = vmatpush1.bf16.msra.mxu0 0
    %1106 = vmatprep.subr.bf16.mxu0 0
    %1107 = vmatpush1.bf16.msra.mxu0 0
    %1108 = vmatprep.subr.bf16.mxu0 0
    %1109 = vmatpush1.bf16.msra.mxu0 0
    %1110 = vmatprep.subr.bf16.mxu0 0
    %1111 = vmatpush1.bf16.msra.mxu0 %v143
    %1112 = vmatprep.subr.bf16.mxu0 0
    %1113 = vmatpush1.bf16.msra.mxu0 %v142
    %1114 = vmatprep.subr.bf16.mxu0 0
    %1115 = vmatpush2.bf16.msra.mxu0 0
    %1116 = vmatprep.subr.bf16.mxu0 0
    %1117 = vmatpush2.bf16.msra.mxu0 0
    %1118 = vmatprep.subr.bf16.mxu0 0
    %1119 = vmatpush2.bf16.msra.mxu0 0
    %1120 = vmatprep.subr.bf16.mxu0 0
    %1121 = vmatpush2.bf16.msra.mxu0 0
    %1122 = vmatprep.subr.bf16.mxu0 0
    %1123 = vmatpush2.bf16.msra.mxu0 0
    %1124 = vmatprep.subr.bf16.mxu0 0
    %1125 = vmatpush2.bf16.msra.mxu0 0
    %1126 = vmatprep.subr.bf16.mxu0 0
    %1127 = vmatpush2.bf16.msra.mxu0 0
    %1128 = vmatprep.subr.bf16.mxu0 0
    %1129 = vmatpush2.bf16.msra.mxu0 0
    %1130 = vmatprep.mubr.bf16.mxu0 0
    %1131 = vmatmul.mubr.bf16.gmra.mxu0 %v1030
    %v1132 = vpop.f32.mrf.mxu0
    %v1133 = vadd.f32 0.0, %v1132
    %v1134 = vpop.f32.mrf.mxu0
    %v1135 = vpop.f32.mrf.mxu0
    %v1136 = vpop.f32.mrf.mxu0
    %1137 = vdwg.mxu0
    %v1138 = vadd.f32 %v1097, %v1133
    %v1139 = vxor.u32 %v1138, 2147483648
    %v1140 = vmul.f32 %v1139, 1.442695
    %v1141 = vpow.pop %v1140
    %v1142 = vadd.f32 %v1141, 1.0
    %v1143 = vrcp.pop %v1142
    %v1144 = vmul.f32 1.0, %v1143
    %v1145 = vtanh.pop %v1138
    %v1146 = vmul.f32 %v1144, %v971
    %1148 = vrot.lane.b32.xlu0 %v1145, 32
    %v1149 = vpop.permute.xlu0 %1148
    %v1151 = vmul.f32 %v1144, %v1149
    %1153 = vrot.lane.b32.xlu0 %v1151, 32
    %v1154 = vpop.permute.xlu0 %1153
    %v1156 = vadd.f32 %v1146, %v1154
    %v1157 = vtanh.pop %v1156
    %1159 = vrot.lane.b32.xlu0 %v1157, 32
    %v1160 = vpop.permute.xlu0 %1159
    %v1162 = vmul.f32 %v1144, %v1160
    %v1163 = vpack.c.bf16 %v1162, %v1162
    %v1164 = vpack.c.bf16 %v1096, %v1096
    %1166 = vrot.lane.b32.xlu0 %v1164, 64
    %v1167 = vpop.permute.xlu0 %1166
    %v1169 = vsel %vm146, %v1167, 0
    %1171 = vmatprep.subr.bf16.mxu0 0
    %1172 = vmatpush1.bf16.msra.mxu0 0
    %1173 = vmatprep.subr.bf16.mxu0 0
    %1174 = vmatpush1.bf16.msra.mxu0 0
    %1175 = vmatprep.subr.bf16.mxu0 0
    %1176 = vmatpush1.bf16.msra.mxu0 0
    %1177 = vmatprep.subr.bf16.mxu0 0
    %1178 = vmatpush1.bf16.msra.mxu0 0
    %1179 = vmatprep.subr.bf16.mxu0 0
    %1180 = vmatpush1.bf16.msra.mxu0 0
    %1181 = vmatprep.subr.bf16.mxu0 0
    %1182 = vmatpush1.bf16.msra.mxu0 0
    %1183 = vmatprep.subr.bf16.mxu0 0
    %1184 = vmatpush1.bf16.msra.mxu0 %v225
    %1185 = vmatprep.subr.bf16.mxu0 0
    %1186 = vmatpush1.bf16.msra.mxu0 %v224
    %1187 = vmatprep.subr.bf16.mxu0 0
    %1188 = vmatpush2.bf16.msra.mxu0 0
    %1189 = vmatprep.subr.bf16.mxu0 0
    %1190 = vmatpush2.bf16.msra.mxu0 0
    %1191 = vmatprep.subr.bf16.mxu0 0
    %1192 = vmatpush2.bf16.msra.mxu0 0
    %1193 = vmatprep.subr.bf16.mxu0 0
    %1194 = vmatpush2.bf16.msra.mxu0 0
    %1195 = vmatprep.subr.bf16.mxu0 0
    %1196 = vmatpush2.bf16.msra.mxu0 0
    %1197 = vmatprep.subr.bf16.mxu0 0
    %1198 = vmatpush2.bf16.msra.mxu0 0
    %1199 = vmatprep.subr.bf16.mxu0 0
    %1200 = vmatpush2.bf16.msra.mxu0 0
    %1201 = vmatprep.subr.bf16.mxu0 0
    %1202 = vmatpush2.bf16.msra.mxu0 0
    %1203 = vmatprep.mubr.bf16.mxu0 0
    %1204 = vmatmul.mubr.bf16.gmra.mxu0 %v1169
    %v1205 = vpop.f32.mrf.mxu0
    %v1206 = vadd.f32 0.0, %v1205
    %v1207 = vpop.f32.mrf.mxu0
    %v1208 = vpop.f32.mrf.mxu0
    %v1209 = vpop.f32.mrf.mxu0
    %1210 = vdwg.mxu0
    %1212 = vrot.lane.b32.xlu0 %v1163, 64
    %v1213 = vpop.permute.xlu0 %1212
    %v1215 = vsel %vm146, %v1213, 0
    %1217 = vmatprep.subr.bf16.mxu0 0
    %1218 = vmatpush1.bf16.msra.mxu0 0
    %1219 = vmatprep.subr.bf16.mxu0 0
    %1220 = vmatpush1.bf16.msra.mxu0 0
    %1221 = vmatprep.subr.bf16.mxu0 0
    %1222 = vmatpush1.bf16.msra.mxu0 0
    %1223 = vmatprep.subr.bf16.mxu0 0
    %1224 = vmatpush1.bf16.msra.mxu0 0
    %1225 = vmatprep.subr.bf16.mxu0 0
    %1226 = vmatpush1.bf16.msra.mxu0 0
    %1227 = vmatprep.subr.bf16.mxu0 0
    %1228 = vmatpush1.bf16.msra.mxu0 0
    %1229 = vmatprep.subr.bf16.mxu0 0
    %1230 = vmatpush1.bf16.msra.mxu0 %v280
    %1231 = vmatprep.subr.bf16.mxu0 0
    %1232 = vmatpush1.bf16.msra.mxu0 %v279
    %1233 = vmatprep.subr.bf16.mxu0 0
    %1234 = vmatpush2.bf16.msra.mxu0 0
    %1235 = vmatprep.subr.bf16.mxu0 0
    %1236 = vmatpush2.bf16.msra.mxu0 0
    %1237 = vmatprep.subr.bf16.mxu0 0
    %1238 = vmatpush2.bf16.msra.mxu0 0
    %1239 = vmatprep.subr.bf16.mxu0 0
    %1240 = vmatpush2.bf16.msra.mxu0 0
    %1241 = vmatprep.subr.bf16.mxu0 0
    %1242 = vmatpush2.bf16.msra.mxu0 0
    %1243 = vmatprep.subr.bf16.mxu0 0
    %1244 = vmatpush2.bf16.msra.mxu0 0
    %1245 = vmatprep.subr.bf16.mxu0 0
    %1246 = vmatpush2.bf16.msra.mxu0 0
    %1247 = vmatprep.subr.bf16.mxu0 0
    %1248 = vmatpush2.bf16.msra.mxu0 0
    %1249 = vmatprep.mubr.bf16.mxu0 0
    %1250 = vmatmul.mubr.bf16.gmra.mxu0 %v1215
    %v1251 = vpop.f32.mrf.mxu0
    %v1252 = vadd.f32 %v1206, %v1251
    %v1253 = vpop.f32.mrf.mxu0
    %v1254 = vpop.f32.mrf.mxu0
    %v1255 = vpop.f32.mrf.mxu0
    %1256 = vdwg.mxu0
    %v1257 = vadd.f32 %v1252, %v330
    %v1258 = vxor.u32 %v1257, 2147483648
    %v1259 = vmul.f32 %v1258, 1.442695
    %v1260 = vpow.pop %v1259
    %v1261 = vadd.f32 %v1260, 1.0
    %v1262 = vrcp.pop %v1261
    %v1263 = vmul.f32 1.0, %v1262
    %v1264 = vtanh.pop %v1257
    %v1265 = vmul.f32 %v1263, %v1090
    %1267 = vrot.lane.b32.xlu0 %v1264, 32
    %v1268 = vpop.permute.xlu0 %1267
    %v1270 = vmul.f32 %v1263, %v1268
    %1272 = vrot.lane.b32.xlu0 %v1270, 32
    %v1273 = vpop.permute.xlu0 %1272
    %v1275 = vadd.f32 %v1265, %v1273
    %v1276 = vtanh.pop %v1275
    %1278 = vrot.lane.b32.xlu0 %v1276, 32
    %v1279 = vpop.permute.xlu0 %1278
    %v1281 = vmul.f32 %v1263, %v1279
    %v1282 = vld [vmem:[%s116] sm:$0x3]
    %1283 = vmatprep.subr.bf16.mxu0 0
    %1284 = vmatpush1.bf16.msra.mxu0 0
    %1285 = vmatprep.subr.bf16.mxu0 0
    %1286 = vmatpush1.bf16.msra.mxu0 0
    %1287 = vmatprep.subr.bf16.mxu0 0
    %1288 = vmatpush1.bf16.msra.mxu0 0
    %1289 = vmatprep.subr.bf16.mxu0 0
    %1290 = vmatpush1.bf16.msra.mxu0 0
    %1291 = vmatprep.subr.bf16.mxu0 0
    %1292 = vmatpush1.bf16.msra.mxu0 0
    %1293 = vmatprep.subr.bf16.mxu0 0
    %1294 = vmatpush1.bf16.msra.mxu0 0
    %1295 = vmatprep.subr.bf16.mxu0 0
    %1296 = vmatpush1.bf16.msra.mxu0 %v143
    %1297 = vmatprep.subr.bf16.mxu0 0
    %1298 = vmatpush1.bf16.msra.mxu0 %v142
    %1299 = vmatprep.subr.bf16.mxu0 0
    %1300 = vmatpush2.bf16.msra.mxu0 0
    %1301 = vmatprep.subr.bf16.mxu0 0
    %1302 = vmatpush2.bf16.msra.mxu0 0
    %1303 = vmatprep.subr.bf16.mxu0 0
    %1304 = vmatpush2.bf16.msra.mxu0 0
    %1305 = vmatprep.subr.bf16.mxu0 0
    %1306 = vmatpush2.bf16.msra.mxu0 0
    %1307 = vmatprep.subr.bf16.mxu0 0
    %1308 = vmatpush2.bf16.msra.mxu0 0
    %1309 = vmatprep.subr.bf16.mxu0 0
    %1310 = vmatpush2.bf16.msra.mxu0 0
    %1311 = vmatprep.subr.bf16.mxu0 0
    %1312 = vmatpush2.bf16.msra.mxu0 0
    %1313 = vmatprep.subr.bf16.mxu0 0
    %1314 = vmatpush2.bf16.msra.mxu0 0
    %1315 = vmatprep.mubr.bf16.mxu0 0
    %1316 = vmatmul.mubr.bf16.gmra.mxu0 %v1215
    %v1317 = vpop.f32.mrf.mxu0
    %v1318 = vadd.f32 0.0, %v1317
    %v1319 = vpop.f32.mrf.mxu0
    %v1320 = vpop.f32.mrf.mxu0
    %v1321 = vpop.f32.mrf.mxu0
    %1322 = vdwg.mxu0
    %v1323 = vadd.f32 %v1282, %v1318
    %v1324 = vxor.u32 %v1323, 2147483648
    %v1325 = vmul.f32 %v1324, 1.442695
    %v1326 = vpow.pop %v1325
    %v1327 = vadd.f32 %v1326, 1.0
    %v1328 = vrcp.pop %v1327
    %v1329 = vmul.f32 1.0, %v1328
    %v1330 = vtanh.pop %v1323
    %v1331 = vmul.f32 %v1329, %v1156
    %1333 = vrot.lane.b32.xlu0 %v1330, 32
    %v1334 = vpop.permute.xlu0 %1333
    %v1336 = vmul.f32 %v1329, %v1334
    %1338 = vrot.lane.b32.xlu0 %v1336, 32
    %v1339 = vpop.permute.xlu0 %1338
    %v1341 = vadd.f32 %v1331, %v1339
    %v1342 = vtanh.pop %v1341
    %1344 = vrot.lane.b32.xlu0 %v1342, 32
    %v1345 = vpop.permute.xlu0 %1344
    %v1347 = vmul.f32 %v1329, %v1345
    %v1348 = vpack.c.bf16 %v1347, %v1347
    %v1349 = vpack.c.bf16 %v1281, %v1281
    %1351 = vrot.lane.b32.xlu0 %v1349, 64
    %v1352 = vpop.permute.xlu0 %1351
    %v1354 = vsel %vm146, %v1352, 0
    %1356 = vmatprep.subr.bf16.mxu0 0
    %1357 = vmatpush1.bf16.msra.mxu0 0
    %1358 = vmatprep.subr.bf16.mxu0 0
    %1359 = vmatpush1.bf16.msra.mxu0 0
    %1360 = vmatprep.subr.bf16.mxu0 0
    %1361 = vmatpush1.bf16.msra.mxu0 0
    %1362 = vmatprep.subr.bf16.mxu0 0
    %1363 = vmatpush1.bf16.msra.mxu0 0
    %1364 = vmatprep.subr.bf16.mxu0 0
    %1365 = vmatpush1.bf16.msra.mxu0 0
    %1366 = vmatprep.subr.bf16.mxu0 0
    %1367 = vmatpush1.bf16.msra.mxu0 0
    %1368 = vmatprep.subr.bf16.mxu0 0
    %1369 = vmatpush1.bf16.msra.mxu0 %v225
    %1370 = vmatprep.subr.bf16.mxu0 0
    %1371 = vmatpush1.bf16.msra.mxu0 %v224
    %1372 = vmatprep.subr.bf16.mxu0 0
    %1373 = vmatpush2.bf16.msra.mxu0 0
    %1374 = vmatprep.subr.bf16.mxu0 0
    %1375 = vmatpush2.bf16.msra.mxu0 0
    %1376 = vmatprep.subr.bf16.mxu0 0
    %1377 = vmatpush2.bf16.msra.mxu0 0
    %1378 = vmatprep.subr.bf16.mxu0 0
    %1379 = vmatpush2.bf16.msra.mxu0 0
    %1380 = vmatprep.subr.bf16.mxu0 0
    %1381 = vmatpush2.bf16.msra.mxu0 0
    %1382 = vmatprep.subr.bf16.mxu0 0
    %1383 = vmatpush2.bf16.msra.mxu0 0
    %1384 = vmatprep.subr.bf16.mxu0 0
    %1385 = vmatpush2.bf16.msra.mxu0 0
    %1386 = vmatprep.subr.bf16.mxu0 0
    %1387 = vmatpush2.bf16.msra.mxu0 0
    %1388 = vmatprep.mubr.bf16.mxu0 0
    %1389 = vmatmul.mubr.bf16.gmra.mxu0 %v1354
    %v1390 = vpop.f32.mrf.mxu0
    %v1391 = vadd.f32 0.0, %v1390
    %v1392 = vpop.f32.mrf.mxu0
    %v1393 = vpop.f32.mrf.mxu0
    %v1394 = vpop.f32.mrf.mxu0
    %1395 = vdwg.mxu0
    %1397 = vrot.lane.b32.xlu0 %v1348, 64
    %v1398 = vpop.permute.xlu0 %1397
    %v1400 = vsel %vm146, %v1398, 0
    %1402 = vmatprep.subr.bf16.mxu0 0
    %1403 = vmatpush1.bf16.msra.mxu0 0
    %1404 = vmatprep.subr.bf16.mxu0 0
    %1405 = vmatpush1.bf16.msra.mxu0 0
    %1406 = vmatprep.subr.bf16.mxu0 0
    %1407 = vmatpush1.bf16.msra.mxu0 0
    %1408 = vmatprep.subr.bf16.mxu0 0
    %1409 = vmatpush1.bf16.msra.mxu0 0
    %1410 = vmatprep.subr.bf16.mxu0 0
    %1411 = vmatpush1.bf16.msra.mxu0 0
    %1412 = vmatprep.subr.bf16.mxu0 0
    %1413 = vmatpush1.bf16.msra.mxu0 0
    %1414 = vmatprep.subr.bf16.mxu0 0
    %1415 = vmatpush1.bf16.msra.mxu0 %v280
    %1416 = vmatprep.subr.bf16.mxu0 0
    %1417 = vmatpush1.bf16.msra.mxu0 %v279
    %1418 = vmatprep.subr.bf16.mxu0 0
    %1419 = vmatpush2.bf16.msra.mxu0 0
    %1420 = vmatprep.subr.bf16.mxu0 0
    %1421 = vmatpush2.bf16.msra.mxu0 0
    %1422 = vmatprep.subr.bf16.mxu0 0
    %1423 = vmatpush2.bf16.msra.mxu0 0
    %1424 = vmatprep.subr.bf16.mxu0 0
    %1425 = vmatpush2.bf16.msra.mxu0 0
    %1426 = vmatprep.subr.bf16.mxu0 0
    %1427 = vmatpush2.bf16.msra.mxu0 0
    %1428 = vmatprep.subr.bf16.mxu0 0
    %1429 = vmatpush2.bf16.msra.mxu0 0
    %1430 = vmatprep.subr.bf16.mxu0 0
    %1431 = vmatpush2.bf16.msra.mxu0 0
    %1432 = vmatprep.subr.bf16.mxu0 0
    %1433 = vmatpush2.bf16.msra.mxu0 0
    %1434 = vmatprep.mubr.bf16.mxu0 0
    %1435 = vmatmul.mubr.bf16.gmra.mxu0 %v1400
    %v1436 = vpop.f32.mrf.mxu0
    %v1437 = vadd.f32 %v1391, %v1436
    %v1438 = vpop.f32.mrf.mxu0
    %v1439 = vpop.f32.mrf.mxu0
    %v1440 = vpop.f32.mrf.mxu0
    %1441 = vdwg.mxu0
    %v1442 = vadd.f32 %v1437, %v330
    %v1443 = vxor.u32 %v1442, 2147483648
    %v1444 = vmul.f32 %v1443, 1.442695
    %v1445 = vpow.pop %v1444
    %v1446 = vadd.f32 %v1445, 1.0
    %v1447 = vrcp.pop %v1446
    %v1448 = vmul.f32 1.0, %v1447
    %v1449 = vtanh.pop %v1442
    %v1450 = vmul.f32 %v1448, %v1275
    %1452 = vrot.lane.b32.xlu0 %v1449, 32
    %v1453 = vpop.permute.xlu0 %1452
    %v1455 = vmul.f32 %v1448, %v1453
    %1457 = vrot.lane.b32.xlu0 %v1455, 32
    %v1458 = vpop.permute.xlu0 %1457
    %v1460 = vadd.f32 %v1450, %v1458
    %v1461 = vtanh.pop %v1460
    %1463 = vrot.lane.b32.xlu0 %v1461, 32
    %v1464 = vpop.permute.xlu0 %1463
    %v1466 = vmul.f32 %v1448, %v1464
    %v1467 = vld [vmem:[%s118] sm:$0x3]
    %1468 = vmatprep.subr.bf16.mxu0 0
    %1469 = vmatpush1.bf16.msra.mxu0 0
    %1470 = vmatprep.subr.bf16.mxu0 0
    %1471 = vmatpush1.bf16.msra.mxu0 0
    %1472 = vmatprep.subr.bf16.mxu0 0
    %1473 = vmatpush1.bf16.msra.mxu0 0
    %1474 = vmatprep.subr.bf16.mxu0 0
    %1475 = vmatpush1.bf16.msra.mxu0 0
    %1476 = vmatprep.subr.bf16.mxu0 0
    %1477 = vmatpush1.bf16.msra.mxu0 0
    %1478 = vmatprep.subr.bf16.mxu0 0
    %1479 = vmatpush1.bf16.msra.mxu0 0
    %1480 = vmatprep.subr.bf16.mxu0 0
    %1481 = vmatpush1.bf16.msra.mxu0 %v143
    %1482 = vmatprep.subr.bf16.mxu0 0
    %1483 = vmatpush1.bf16.msra.mxu0 %v142
    %1484 = vmatprep.subr.bf16.mxu0 0
    %1485 = vmatpush2.bf16.msra.mxu0 0
    %1486 = vmatprep.subr.bf16.mxu0 0
    %1487 = vmatpush2.bf16.msra.mxu0 0
    %1488 = vmatprep.subr.bf16.mxu0 0
    %1489 = vmatpush2.bf16.msra.mxu0 0
    %1490 = vmatprep.subr.bf16.mxu0 0
    %1491 = vmatpush2.bf16.msra.mxu0 0
    %1492 = vmatprep.subr.bf16.mxu0 0
    %1493 = vmatpush2.bf16.msra.mxu0 0
    %1494 = vmatprep.subr.bf16.mxu0 0
    %1495 = vmatpush2.bf16.msra.mxu0 0
    %1496 = vmatprep.subr.bf16.mxu0 0
    %1497 = vmatpush2.bf16.msra.mxu0 0
    %1498 = vmatprep.subr.bf16.mxu0 0
    %1499 = vmatpush2.bf16.msra.mxu0 0
    %1500 = vmatprep.mubr.bf16.mxu0 0
    %1501 = vmatmul.mubr.bf16.gmra.mxu0 %v1400
    %v1502 = vpop.f32.mrf.mxu0
    %v1503 = vadd.f32 0.0, %v1502
    %v1504 = vpop.f32.mrf.mxu0
    %v1505 = vpop.f32.mrf.mxu0
    %v1506 = vpop.f32.mrf.mxu0
    %1507 = vdwg.mxu0
    %v1508 = vadd.f32 %v1467, %v1503
    %v1509 = vxor.u32 %v1508, 2147483648
    %v1510 = vmul.f32 %v1509, 1.442695
    %v1511 = vpow.pop %v1510
    %v1512 = vadd.f32 %v1511, 1.0
    %v1513 = vrcp.pop %v1512
    %v1514 = vmul.f32 1.0, %v1513
    %v1515 = vtanh.pop %v1508
    %v1516 = vmul.f32 %v1514, %v1341
    %1518 = vrot.lane.b32.xlu0 %v1515, 32
    %v1519 = vpop.permute.xlu0 %1518
    %v1521 = vmul.f32 %v1514, %v1519
    %1523 = vrot.lane.b32.xlu0 %v1521, 32
    %v1524 = vpop.permute.xlu0 %1523
    %v1526 = vadd.f32 %v1516, %v1524
    %v1527 = vtanh.pop %v1526
    %1529 = vrot.lane.b32.xlu0 %v1527, 32
    %v1530 = vpop.permute.xlu0 %1529
    %v1532 = vmul.f32 %v1514, %v1530
    %v1533 = vpack.c.bf16 %v1532, %v1532
    %v1534 = vpack.c.bf16 %v1466, %v1466
    %1536 = vrot.lane.b32.xlu0 %v1534, 64
    %v1537 = vpop.permute.xlu0 %1536
    %v1539 = vsel %vm146, %v1537, 0
    %1541 = vmatprep.subr.bf16.mxu0 0
    %1542 = vmatpush1.bf16.msra.mxu0 0
    %1543 = vmatprep.subr.bf16.mxu0 0
    %1544 = vmatpush1.bf16.msra.mxu0 0
    %1545 = vmatprep.subr.bf16.mxu0 0
    %1546 = vmatpush1.bf16.msra.mxu0 0
    %1547 = vmatprep.subr.bf16.mxu0 0
    %1548 = vmatpush1.bf16.msra.mxu0 0
    %1549 = vmatprep.subr.bf16.mxu0 0
    %1550 = vmatpush1.bf16.msra.mxu0 0
    %1551 = vmatprep.subr.bf16.mxu0 0
    %1552 = vmatpush1.bf16.msra.mxu0 0
    %1553 = vmatprep.subr.bf16.mxu0 0
    %1554 = vmatpush1.bf16.msra.mxu0 %v225
    %1555 = vmatprep.subr.bf16.mxu0 0
    %1556 = vmatpush1.bf16.msra.mxu0 %v224
    %1557 = vmatprep.subr.bf16.mxu0 0
    %1558 = vmatpush2.bf16.msra.mxu0 0
    %1559 = vmatprep.subr.bf16.mxu0 0
    %1560 = vmatpush2.bf16.msra.mxu0 0
    %1561 = vmatprep.subr.bf16.mxu0 0
    %1562 = vmatpush2.bf16.msra.mxu0 0
    %1563 = vmatprep.subr.bf16.mxu0 0
    %1564 = vmatpush2.bf16.msra.mxu0 0
    %1565 = vmatprep.subr.bf16.mxu0 0
    %1566 = vmatpush2.bf16.msra.mxu0 0
    %1567 = vmatprep.subr.bf16.mxu0 0
    %1568 = vmatpush2.bf16.msra.mxu0 0
    %1569 = vmatprep.subr.bf16.mxu0 0
    %1570 = vmatpush2.bf16.msra.mxu0 0
    %1571 = vmatprep.subr.bf16.mxu0 0
    %1572 = vmatpush2.bf16.msra.mxu0 0
    %1573 = vmatprep.mubr.bf16.mxu0 0
    %1574 = vmatmul.mubr.bf16.gmra.mxu0 %v1539
    %v1575 = vpop.f32.mrf.mxu0
    %v1576 = vadd.f32 0.0, %v1575
    %v1577 = vpop.f32.mrf.mxu0
    %v1578 = vpop.f32.mrf.mxu0
    %v1579 = vpop.f32.mrf.mxu0
    %1580 = vdwg.mxu0
    %1582 = vrot.lane.b32.xlu0 %v1533, 64
    %v1583 = vpop.permute.xlu0 %1582
    %v1585 = vsel %vm146, %v1583, 0
    %1587 = vmatprep.subr.bf16.mxu0 0
    %1588 = vmatpush1.bf16.msra.mxu0 0
    %1589 = vmatprep.subr.bf16.mxu0 0
    %1590 = vmatpush1.bf16.msra.mxu0 0
    %1591 = vmatprep.subr.bf16.mxu0 0
    %1592 = vmatpush1.bf16.msra.mxu0 0
    %1593 = vmatprep.subr.bf16.mxu0 0
    %1594 = vmatpush1.bf16.msra.mxu0 0
    %1595 = vmatprep.subr.bf16.mxu0 0
    %1596 = vmatpush1.bf16.msra.mxu0 0
    %1597 = vmatprep.subr.bf16.mxu0 0
    %1598 = vmatpush1.bf16.msra.mxu0 0
    %1599 = vmatprep.subr.bf16.mxu0 0
    %1600 = vmatpush1.bf16.msra.mxu0 %v280
    %1601 = vmatprep.subr.bf16.mxu0 0
    %1602 = vmatpush1.bf16.msra.mxu0 %v279
    %1603 = vmatprep.subr.bf16.mxu0 0
    %1604 = vmatpush2.bf16.msra.mxu0 0
    %1605 = vmatprep.subr.bf16.mxu0 0
    %1606 = vmatpush2.bf16.msra.mxu0 0
    %1607 = vmatprep.subr.bf16.mxu0 0
    %1608 = vmatpush2.bf16.msra.mxu0 0
    %1609 = vmatprep.subr.bf16.mxu0 0
    %1610 = vmatpush2.bf16.msra.mxu0 0
    %1611 = vmatprep.subr.bf16.mxu0 0
    %1612 = vmatpush2.bf16.msra.mxu0 0
    %1613 = vmatprep.subr.bf16.mxu0 0
    %1614 = vmatpush2.bf16.msra.mxu0 0
    %1615 = vmatprep.subr.bf16.mxu0 0
    %1616 = vmatpush2.bf16.msra.mxu0 0
    %1617 = vmatprep.subr.bf16.mxu0 0
    %1618 = vmatpush2.bf16.msra.mxu0 0
    %1619 = vmatprep.mubr.bf16.mxu0 0
    %1620 = vmatmul.mubr.bf16.gmra.mxu0 %v1585
    %v1621 = vpop.f32.mrf.mxu0
    %v1622 = vadd.f32 %v1576, %v1621
    %v1623 = vpop.f32.mrf.mxu0
    %v1624 = vpop.f32.mrf.mxu0
    %v1625 = vpop.f32.mrf.mxu0
    %1626 = vdwg.mxu0
    %v1627 = vadd.f32 %v1622, %v330
    %v1628 = vxor.u32 %v1627, 2147483648
    %v1629 = vmul.f32 %v1628, 1.442695
    %v1630 = vpow.pop %v1629
    %v1631 = vadd.f32 %v1630, 1.0
    %v1632 = vrcp.pop %v1631
    %v1633 = vmul.f32 1.0, %v1632
    %v1634 = vtanh.pop %v1627
    %v1635 = vmul.f32 %v1633, %v1460
    %1637 = vrot.lane.b32.xlu0 %v1634, 32
    %v1638 = vpop.permute.xlu0 %1637
    %v1640 = vmul.f32 %v1633, %v1638
    %1642 = vrot.lane.b32.xlu0 %v1640, 32
    %v1643 = vpop.permute.xlu0 %1642
    %v1645 = vadd.f32 %v1635, %v1643
    %v1646 = vtanh.pop %v1645
    %1648 = vrot.lane.b32.xlu0 %v1646, 32
    %v1649 = vpop.permute.xlu0 %1648
    %v1651 = vmul.f32 %v1633, %v1649
    %1653 = vrot.lane.b32.xlu0 %v1532, 64
    %v1654 = vpop.permute.xlu0 %1653
    %vm1656 = vcmask 254976
    %1657 = vst.msk [vmem:[#allocation5] sm:$0x3] %vm1656, %v1654
    %1659 = vrot.lane.b32.xlu0 %v1526, 96
    %v1660 = vpop.permute.xlu0 %1659
    %1662 = vst.msk [vmem:[#allocation7] sm:$0x3] %vm1656, %v1660
    %1664 = vrot.lane.b32.xlu0 %v1651, 64
    %v1665 = vpop.permute.xlu0 %1664
    %s1667 = scalar_lea.vmem [#allocation5], 2
    %1668 = vst.msk [vmem:[%s1667] sm:$0x3] %vm1656, %v1665
    %1670 = vrot.lane.b32.xlu0 %v1645, 96
    %v1671 = vpop.permute.xlu0 %1670
    %s1673 = scalar_lea.vmem [#allocation7], 2
    %1674 = vst.msk [vmem:[%s1673] sm:$0x3] %vm1656, %v1671
    %v1675 = vpack.c.bf16 %v1651, %v1651
    %v1676 = vld [vmem:[%s7] sm:$0xf]
    %v1677 = vld [vmem:[%s7 + $0x4] sm:$0xf]
    %v1678 = vld [vmem:[%s7 + $0x8] sm:$0xf]
    %v1679 = vld [vmem:[%s7 + $0xc] sm:$0xf]
    %v1680 = vld [vmem:[%s8] sm:$0x1]
    %v1682 = vlaneseq
    %v1683 = vshrl.u32 %v1682, 7
    %v1684 = vsub.s32 0, %v1683
    %v1685 = vrot.slane %v1680, %v1684
    %1688 = vrot.lane.b32.xlu0 %v1675, 64
    %v1689 = vpop.permute.xlu0 %1688
    %v1694 = vunpack.c.l.b16 %v1676
    %v1695 = vunpack.c.l.b16 %v1677
    %v1696 = vunpack.c.l.b16 %v1678
    %v1697 = vunpack.c.l.b16 %v1679
    %v1698 = vpack.c.b16 %v1695, %v1694
    %v1699 = vpack.c.b16 %v1697, %v1696
    %v1703 = vsel %vm146, %v1689, 0
    %1705 = vmatprep.subr.bf16.mxu0 0
    %1706 = vmatpush1.bf16.msra.mxu0 0
    %1707 = vmatprep.subr.bf16.mxu0 0
    %1708 = vmatpush1.bf16.msra.mxu0 0
    %1709 = vmatprep.subr.bf16.mxu0 0
    %1710 = vmatpush1.bf16.msra.mxu0 0
    %1711 = vmatprep.subr.bf16.mxu0 0
    %1712 = vmatpush1.bf16.msra.mxu0 0
    %1713 = vmatprep.subr.bf16.mxu0 0
    %1714 = vmatpush1.bf16.msra.mxu0 0
    %1715 = vmatprep.subr.bf16.mxu0 0
    %1716 = vmatpush1.bf16.msra.mxu0 0
    %1717 = vmatprep.subr.bf16.mxu0 0
    %1718 = vmatpush1.bf16.msra.mxu0 %v1699
    %1719 = vmatprep.subr.bf16.mxu0 0
    %1720 = vmatpush1.bf16.msra.mxu0 %v1698
    %1721 = vmatprep.subr.bf16.mxu0 0
    %1722 = vmatpush2.bf16.msra.mxu0 0
    %1723 = vmatprep.subr.bf16.mxu0 0
    %1724 = vmatpush2.bf16.msra.mxu0 0
    %1725 = vmatprep.subr.bf16.mxu0 0
    %1726 = vmatpush2.bf16.msra.mxu0 0
    %1727 = vmatprep.subr.bf16.mxu0 0
    %1728 = vmatpush2.bf16.msra.mxu0 0
    %1729 = vmatprep.subr.bf16.mxu0 0
    %1730 = vmatpush2.bf16.msra.mxu0 0
    %1731 = vmatprep.subr.bf16.mxu0 0
    %1732 = vmatpush2.bf16.msra.mxu0 0
    %1733 = vmatprep.subr.bf16.mxu0 0
    %1734 = vmatpush2.bf16.msra.mxu0 0
    %1735 = vmatprep.subr.bf16.mxu0 0
    %1736 = vmatpush2.bf16.msra.mxu0 0
    %1737 = vmatprep.mubr.bf16.mxu0 0
    %1738 = vmatmul.mubr.bf16.gmra.mxu0 %v1703
    %v1739 = vpop.f32.mrf.mxu0
    %v1740 = vadd.f32 %v1685, %v1739
    %v1741 = vpop.f32.mrf.mxu0
    %v1742 = vpop.f32.mrf.mxu0
    %v1743 = vpop.f32.mrf.mxu0
    %1744 = vdwg.mxu0
    %v1745 = vxor.u32 %v1740, 2147483648
    %v1746 = vmul.f32 %v1745, 1.442695
    %v1747 = vpow.pop %v1746
    %v1748 = vadd.f32 %v1747, 1.0
    %v1749 = vrcp.pop %v1748
    %v1750 = vmul.f32 1.0, %v1749
    %vm1751 = vcmask 25600
    %1752 = vst.msk [vmem:[#allocation3] sm:$0x3] %vm1751, %v1750
    // Predicated region
    $region38: #{classifier_lstm_forward.1} parent=1 // pred_check
      _
    $region39: #{classifier_lstm_forward.1} parent=1 // pred_check_branch
      %1754 = sbr.rel (0) target = $region41
    $region40: #{classifier_lstm_forward.1} parent=1 // pred_region
      %s1756 = ssub.s32 32, 32
      %1757 = vsyncadd [#allocation4], %s1756
      %s1759 = sshll.u32 [#allocation3], 4
      %s1760 = int_to_ptr.vmem [resolvable:$true] %s1759
      %1762 = dma.vmem_to_hbm [thread:$0]  %s1760, 32, %s9, [#allocation4]
    $region41: #{classifier_lstm_forward.1} parent=1 // pred_fallthru
      _
    // Predicated region
    $region42: #{classifier_lstm_forward.1} parent=1 // pred_check
      _
    $region43: #{classifier_lstm_forward.1} parent=1 // pred_check_branch
      %1764 = sbr.rel (0) target = $region45
    $region44: #{classifier_lstm_forward.1} parent=1 // pred_region
      %s1766 = ssub.s32 64, 64
      %1767 = vsyncadd [#allocation6], %s1766
      %s1768 = sshll.u32 [#allocation5], 4
      %s1769 = int_to_ptr.vmem [resolvable:$true] %s1768
      %1774 = dma.vmem_to_hbm [thread:$0]  %s1769, 64, %s10, [#allocation6], 32, 32, 2
    $region45: #{classifier_lstm_forward.1} parent=1 // pred_fallthru
      _
    // Predicated region
    $region46: #{classifier_lstm_forward.1} parent=1 // pred_check
      _
    $region47: #{classifier_lstm_forward.1} parent=1 // pred_check_branch
      %1776 = sbr.rel (0) target = $region49
    $region48: #{classifier_lstm_forward.1} parent=1 // pred_region
      %s1778 = ssub.s32 64, 64
      %1779 = vsyncadd [#allocation6], %s1778
      %s1780 = sshll.u32 [#allocation7], 4
      %s1781 = int_to_ptr.vmem [resolvable:$true] %s1780
      %1786 = dma.vmem_to_hbm [thread:$0]  %s1781, 64, %s11, [#allocation6], 32, 32, 2
    $region49: #{classifier_lstm_forward.1} parent=1 // pred_fallthru
      _
    // Predicated region
    $region50: #{classifier_lstm_forward.1} parent=1 // pred_check
      _
    $region51: #{classifier_lstm_forward.1} parent=1 // pred_check_branch
      %1788 = sbr.rel (0) target = $region53
    $region52: #{classifier_lstm_forward.1} parent=1 // pred_region
      %1789 = dma.done [#allocation4], 32
    $region53: #{classifier_lstm_forward.1} parent=1 // pred_fallthru
      _
    // Predicated region
    $region54: #{classifier_lstm_forward.1} parent=1 // pred_check
      _
    $region55: #{classifier_lstm_forward.1} parent=1 // pred_check_branch
      %1791 = sbr.rel (0) target = $region57
    $region56: #{classifier_lstm_forward.1} parent=1 // pred_region
      %1792 = dma.done [#allocation6], 64
    $region57: #{classifier_lstm_forward.1} parent=1 // pred_fallthru
      _
    // Predicated region
    $region58: #{classifier_lstm_forward.1} parent=1 // pred_check
      _
    $region59: #{classifier_lstm_forward.1} parent=1 // pred_check_branch
      %1794 = sbr.rel (0) target = $region61
    $region60: #{classifier_lstm_forward.1} parent=1 // pred_region
      %1795 = dma.done [#allocation6], 64
    $region61: #{classifier_lstm_forward.1} parent=1 // pred_fallthru
      _
    %1796 = vsyncpa [#allocation4], 1
    %1797 = vsyncpa [#allocation6], 1

</llo_original>
